<compile_context>
chip_gen: v7x
topology: tpu7x:2x2x1
jax: 0.10.0
libtpu: 0.0.40
codegen_flags: <defaults>
</compile_context>

<pallas_src>
import jax
import jax.numpy as jnp
from jax.experimental import pallas as pl
from jax.experimental.pallas import tpu as pltpu

IN_DIM = 784
HID_DIM = 400
OUT_DIM = 3
OUT_PAD = 128          # lane-dense output width (zero-padded; sliced to 3 outside)
TM_MAX = 1024          # batch tile upper bound (multiple of 16)
MIN_TILE = 16          # bf16 sublane packing granule


def _round_up(x, m):
    return (x + m - 1) // m * m


def _cdiv(a, b):
    return (a + b - 1) // b


def two_layer_mlp_kernel(x_ref, w1_ref, b1_ref, w2_ref, b2_ref, o_ref):
    # hidden = sigmoid(x @ W1 + b1); both GEMMs in bf16 with f32 accumulation.
    x_bf = x_ref[...].astype(jnp.bfloat16)               # VPU cast, hidden under MXU/DMA
    h = jnp.dot(x_bf, w1_ref[...], preferred_element_type=jnp.float32)
    h = jax.nn.sigmoid(h + b1_ref[...])                  # f32 elementwise (EUP logistic)
    # out = hidden @ W2_padded + b2_padded  (bf16 operands, f32 accumulate)
    out = jnp.dot(h.astype(jnp.bfloat16), w2_ref[...],
                  preferred_element_type=jnp.float32)
    o_ref[...] = (out + b2_ref[...]).astype(o_ref.dtype)


def _pick_tiling(batch):
    """Balanced batch tiling: tile count first, then tile size (<=TM_MAX)."""
    b = max(batch, 1)
    num_tiles = _cdiv(b, TM_MAX)
    if b >= 2 * MIN_TILE:
        # Give v7x's 2 TensorCores an even split whenever the batch allows it.
        num_tiles = max(num_tiles, 2)
        num_tiles += num_tiles % 2
    tm = min(_round_up(_cdiv(b, num_tiles), MIN_TILE), TM_MAX)
    b_pad = num_tiles * tm
    return num_tiles, tm, b_pad


def two_layer_network(x, w1, b1, w2, b2):
    """x: (B, 784) f32; w1: (784, 400); b1: (400,); w2: (400, 3); b2: (3,)."""
    B = x.shape[0]
    num_tiles, tm, b_pad = _pick_tiling(B)

    x_p = x if b_pad == B else jnp.pad(x, ((0, b_pad - B), (0, 0)))
    x_p = x_p.astype(jnp.float32)                         # cast to bf16 happens in-kernel
    w1_bf = w1.astype(jnp.bfloat16)                       # bf16 MXU operand (resident)
    b1_2d = b1.reshape(1, HID_DIM).astype(jnp.float32)
    w2_bf = jnp.pad(w2.astype(jnp.bfloat16),              # zero pad preserved in bf16
                    ((0, 0), (0, OUT_PAD - OUT_DIM)))
    b2_p = jnp.pad(b2.reshape(1, OUT_DIM).astype(jnp.float32),
                   ((0, 0), (0, OUT_PAD - OUT_DIM)))

    grid = (num_tiles,)

    # VMEM budget at tm=1024 (lane padding 784->896, 400->512):
    #   2 x-tile bufs (~7 MiB f32) + W1 bf16 (~1.6 MiB x2 bufs) + W2/b (~0.2 MiB)
    #   + hidden temp (~2 MiB) + 2 out bufs (~1 MiB)  ->  ~12-14 MiB.
    flops = 2 * b_pad * (IN_DIM * HID_DIM + HID_DIM * OUT_PAD)
    bytes_accessed = (b_pad * IN_DIM * 4            # x (f32, read once by the kernel)
                      + IN_DIM * HID_DIM * 2        # W1 (bf16)
                      + HID_DIM * OUT_PAD * 2       # W2 (bf16)
                      + HID_DIM * 4 + OUT_PAD * 4   # biases (f32)
                      + b_pad * OUT_PAD * 4)        # out (f32)

    out = pl.pallas_call(
        two_layer_mlp_kernel,
        out_shape=jax.ShapeDtypeStruct((b_pad, OUT_PAD), jnp.float32),
        grid=grid,
        in_specs=[
            pl.BlockSpec((tm, IN_DIM), lambda i: (i, 0)),          # x tile (f32)
            pl.BlockSpec((IN_DIM, HID_DIM), lambda i: (0, 0)),     # W1 resident (bf16)
            pl.BlockSpec((1, HID_DIM), lambda i: (0, 0)),          # b1 resident
            pl.BlockSpec((HID_DIM, OUT_PAD), lambda i: (0, 0)),    # W2 resident (bf16)
            pl.BlockSpec((1, OUT_PAD), lambda i: (0, 0)),          # b2 resident
        ],
        out_specs=pl.BlockSpec((tm, OUT_PAD), lambda i: (i, 0)),
        compiler_params=pltpu.CompilerParams(
            dimension_semantics=("parallel",),       # v7x: shard batch tiles over 2 TCs
            vmem_limit_bytes=32 * 1024 * 1024,       # above budget; under v7x 64 MiB
        ),
        cost_estimate=pl.CostEstimate(
            flops=flops,
            transcendentals=b_pad * HID_DIM,
            bytes_accessed=bytes_accessed,
        ),
    )(x_p, w1_bf, b1_2d, w2_bf, b2_p)

    return out[:B, :OUT_DIM]


def init_params(key):
    """Deterministic init mirroring torch.nn.Linear's U(-1/sqrt(fan_in), 1/sqrt(fan_in))."""
    k1, k2, k3, k4 = jax.random.split(key, 4)
    bound1 = 1.0 / jnp.sqrt(jnp.float32(IN_DIM))
    bound2 = 1.0 / jnp.sqrt(jnp.float32(HID_DIM))
    # Stored as (in, out) so the kernel computes x @ W (== PyTorch x @ W.T).
    w1 = jax.random.uniform(k1, (IN_DIM, HID_DIM), jnp.float32, -bound1, bound1)
    b1 = jax.random.uniform(k2, (HID_DIM,), jnp.float32, -bound1, bound1)
    w2 = jax.random.uniform(k3, (HID_DIM, OUT_DIM), jnp.float32, -bound2, bound2)
    b2 = jax.random.uniform(k4, (OUT_DIM,), jnp.float32, -bound2, bound2)
    return w1, b1, w2, b2


def _reference_bf16(x, w1, b1, w2, b2):
    """Pure-JAX reference with the same bf16 operand dtypes as the kernel."""
    h = jax.nn.sigmoid(
        jnp.dot(x.astype(jnp.bfloat16), w1.astype(jnp.bfloat16),
                preferred_element_type=jnp.float32) + b1)
    return jnp.dot(h.astype(jnp.bfloat16), w2.astype(jnp.bfloat16),
                   preferred_element_type=jnp.float32) + b2


if __name__ == "__main__":
    key = jax.random.PRNGKey(0)
    k_params, k_x1, k_x2 = jax.random.split(key, 3)
    w1, b1, w2, b2 = init_params(k_params)

    # Small single-tile case (grid=(1,)).
    batch = 8
    x = jax.random.normal(k_x1, (batch, IN_DIM), dtype=jnp.float32)
    out = jax.block_until_ready(two_layer_network(x, w1, b1, w2, b2))
    assert out.shape == (batch, OUT_DIM)
    assert jnp.allclose(out, _reference_bf16(x, w1, b1, w2, b2), atol=1e-3, rtol=1e-3)
    ref_f32 = jax.nn.sigmoid(x @ w1 + b1) @ w2 + b2
    assert jnp.allclose(out, ref_f32, atol=2e-2, rtol=2e-2)

    # Ragged multi-tile case (exercises balanced tiling + 2-tile parallel grid).
    batch2 = 40
    x2 = jax.random.normal(k_x2, (batch2, IN_DIM), dtype=jnp.float32)
    out2 = jax.block_until_ready(two_layer_network(x2, w1, b1, w2, b2))
    assert out2.shape == (batch2, OUT_DIM)
    assert jnp.allclose(out2, _reference_bf16(x2, w1, b1, w2, b2), atol=1e-3, rtol=1e-3)

    print("KERNEL_OK")
</pallas_src>

<mosaic_0001>
module attributes {stable_mosaic.version = 11 : i64} {
  func.func @two_layer_mlp_kernel(%arg0: i32, %arg1: memref<16x784xf32, #tpu.memory_space<vmem>>, %arg2: memref<784x400xbf16, #tpu.memory_space<vmem>>, %arg3: memref<1x400xf32, #tpu.memory_space<vmem>>, %arg4: memref<400x128xbf16, #tpu.memory_space<vmem>>, %arg5: memref<1x128xf32, #tpu.memory_space<vmem>>, %arg6: memref<16x128xf32, #tpu.memory_space<vmem>>) attributes {dimension_semantics = [#tpu.dimension_semantics<parallel>], iteration_bounds = array<i64: 1>, scalar_prefetch = 0 : i64, scratch_operands = 0 : i64, tpu.core_type = #tpu.core_type<tc>, window_params = [{transform_indices = @transform_0, window_bounds = array<i64: 16, 784>}, {pipeline_mode = #tpu.pipeline_mode<synchronous>, transform_indices = @transform_1, window_bounds = array<i64: 784, 400>}, {pipeline_mode = #tpu.pipeline_mode<synchronous>, transform_indices = @transform_2, window_bounds = array<i64: 1, 400>}, {pipeline_mode = #tpu.pipeline_mode<synchronous>, transform_indices = @transform_3, window_bounds = array<i64: 400, 128>}, {pipeline_mode = #tpu.pipeline_mode<synchronous>, transform_indices = @transform_4, window_bounds = array<i64: 1, 128>}, {transform_indices = @transform_5, window_bounds = array<i64: 16, 128>}]} {
    %c0 = arith.constant 0 : index
    %c0_0 = arith.constant 0 : index
    %0 = vector.load %arg1[%c0, %c0_0] : memref<16x784xf32, #tpu.memory_space<vmem>>, vector<16x784xf32>
    %1 = arith.truncf %0 : vector<16x784xf32> to vector<16x784xbf16>
    %c0_1 = arith.constant 0 : index
    %c0_2 = arith.constant 0 : index
    %2 = vector.load %arg2[%c0_1, %c0_2] : memref<784x400xbf16, #tpu.memory_space<vmem>>, vector<784x400xbf16>
    %cst = arith.constant dense<0.000000e+00> : vector<16x400xf32>
    %3 = tpu.matmul %1, %2, %cst {dimension_numbers = #tpu.dot_dimension_numbers<[1], [0], [0], [1], [0, 0, 1, 1], [], []>} : vector<16x784xbf16>, vector<784x400xbf16>, vector<16x400xf32> -> vector<16x400xf32>
    %c0_3 = arith.constant 0 : index
    %c0_4 = arith.constant 0 : index
    %4 = vector.load %arg3[%c0_3, %c0_4] : memref<1x400xf32, #tpu.memory_space<vmem>>, vector<1x400xf32>
    %5 = vector.broadcast %4 : vector<1x400xf32> to vector<16x400xf32>
    %6 = arith.addf %3, %5 : vector<16x400xf32>
    %7 = arith.negf %6 : vector<16x400xf32>
    %8 = math.exp %7 : vector<16x400xf32>
    %cst_5 = arith.constant 1.000000e+00 : f32
    %9 = vector.broadcast %cst_5 : f32 to vector<16x400xf32>
    %10 = arith.addf %9, %8 : vector<16x400xf32>
    %11 = arith.divf %9, %10 : vector<16x400xf32>
    %12 = arith.truncf %11 : vector<16x400xf32> to vector<16x400xbf16>
    %c0_6 = arith.constant 0 : index
    %c0_7 = arith.constant 0 : index
    %13 = vector.load %arg4[%c0_6, %c0_7] : memref<400x128xbf16, #tpu.memory_space<vmem>>, vector<400x128xbf16>
    %cst_8 = arith.constant dense<0.000000e+00> : vector<16x128xf32>
    %14 = tpu.matmul %12, %13, %cst_8 {dimension_numbers = #tpu.dot_dimension_numbers<[1], [0], [0], [1], [0, 0, 1, 1], [], []>} : vector<16x400xbf16>, vector<400x128xbf16>, vector<16x128xf32> -> vector<16x128xf32>
    %c0_9 = arith.constant 0 : index
    %c0_10 = arith.constant 0 : index
    %15 = vector.load %arg5[%c0_9, %c0_10] : memref<1x128xf32, #tpu.memory_space<vmem>>, vector<1x128xf32>
    %16 = vector.broadcast %15 : vector<1x128xf32> to vector<16x128xf32>
    %17 = arith.addf %14, %16 : vector<16x128xf32>
    %c0_11 = arith.constant 0 : index
    %c0_12 = arith.constant 0 : index
    %18 = vector.load %arg6[%c0_11, %c0_12] : memref<16x128xf32, #tpu.memory_space<vmem>>, vector<16x128xf32>
    tpu.vector_store %arg6[%c0_11, %c0_12], %17 {strides = array<i32>} : memref<16x128xf32, #tpu.memory_space<vmem>>, vector<16x128xf32>,
    return
  }
  func.func @transform_0(%arg0: i32) -> (i32, i32) {
    %c0_i32 = arith.constant 0 : i32
    %c0_i32_0 = arith.constant 0 : i32
    return %arg0, %c0_i32 : i32, i32
  }
  func.func @transform_1(%arg0: i32) -> (i32, i32) {
    %c0_i32 = arith.constant 0 : i32
    %c0_i32_0 = arith.constant 0 : i32
    %c0_i32_1 = arith.constant 0 : i32
    return %c0_i32, %c0_i32_0 : i32, i32
  }
  func.func @transform_2(%arg0: i32) -> (i32, i32) {
    %c0_i32 = arith.constant 0 : i32
    %c0_i32_0 = arith.constant 0 : i32
    %c0_i32_1 = arith.constant 0 : i32
    return %c0_i32, %c0_i32_0 : i32, i32
  }
  func.func @transform_3(%arg0: i32) -> (i32, i32) {
    %c0_i32 = arith.constant 0 : i32
    %c0_i32_0 = arith.constant 0 : i32
    %c0_i32_1 = arith.constant 0 : i32
    return %c0_i32, %c0_i32_0 : i32, i32
  }
  func.func @transform_4(%arg0: i32) -> (i32, i32) {
    %c0_i32 = arith.constant 0 : i32
    %c0_i32_0 = arith.constant 0 : i32
    %c0_i32_1 = arith.constant 0 : i32
    return %c0_i32, %c0_i32_0 : i32, i32
  }
  func.func @transform_5(%arg0: i32) -> (i32, i32) {
    %c0_i32 = arith.constant 0 : i32
    %c0_i32_0 = arith.constant 0 : i32
    return %arg0, %c0_i32 : i32, i32
  }
}

</mosaic_0001>

<llo_original>
// kernel: tpu_custom_call.1
$region0: #{tpu_custom_call.1}
  #allocation0 [shape = 'u32[]', space=smem, size = 0x4, offset = 0x4, fixed_abs, tag = 'smem constant byte address 0x4 - core index']
  #allocation1 [shape = 'u32[144,128]{1,0:T(1,128)}', space=vmem, size = 0x12000, scoped, tag = 'internal scratch']
  %s0 = inlined_call_operand.vmem [shape: f32[16,784], index: 0, kind: input, shape index: {}]
  %s1 = inlined_call_operand.vmem [shape: bf16[784,400], index: 1, kind: input, shape index: {}]
  %s2 = inlined_call_operand.vmem [shape: f32[1,400], index: 2, kind: input, shape index: {}]
  %s3 = inlined_call_operand.vmem [shape: bf16[400,128], index: 3, kind: input, shape index: {}]
  %s4 = inlined_call_operand.vmem [shape: f32[1,128], index: 4, kind: input, shape index: {}]
  %s5 = inlined_call_operand.hbm [shape: f32[16,128], index: 5, kind: output, shape index: {}]
  %s6 = sld [smem:[#allocation0]]
  $region30: #{tpu_custom_call.1} parent=0
    _
  %s8 = ssub.s32 1, %s6
  %s9 = scalar_select 0, %s8, %s6
  $region1: #{tpu_custom_call.1} parent=0
    #allocation2 [shape = 'u8[8192]{0}', space=vmem, size = 0x2000, scoped, tag = 'output window, operand 0, single buffered']
    #allocation3 [shape = 's32[1]{0}', space=sflag, size = 0x4, scoped, tag = 'scoped memory for tpu_custom_call.1']
    %10 = vsyncpa [#allocation3], 0
    // Predicated region
    $region2: #{tpu_custom_call.1} parent=1 // pred_check
      _
    $region3: #{tpu_custom_call.1} parent=1 // pred_check_branch
      %12 = sbr.rel (0) target = $region5
    $region4: #{tpu_custom_call.1} parent=1 // pred_region
      _
    $region5: #{tpu_custom_call.1} parent=1 // pred_fallthru
      _
    // Predicated region
    $region6: #{tpu_custom_call.1} parent=1 // pred_check
      _
    $region7: #{tpu_custom_call.1} parent=1 // pred_check_branch
      %14 = sbr.rel (0) target = $region9
    $region8: #{tpu_custom_call.1} parent=1 // pred_region
      _
    $region9: #{tpu_custom_call.1} parent=1 // pred_fallthru
      _
    // Predicated region
    $region10: #{tpu_custom_call.1} parent=1 // pred_check
      _
    $region11: #{tpu_custom_call.1} parent=1 // pred_check_branch
      %16 = sbr.rel (0) target = $region13
    $region12: #{tpu_custom_call.1} parent=1 // pred_region
      _
    $region13: #{tpu_custom_call.1} parent=1 // pred_fallthru
      _
    // Predicated region
    $region14: #{tpu_custom_call.1} parent=1 // pred_check
      _
    $region15: #{tpu_custom_call.1} parent=1 // pred_check_branch
      %18 = sbr.rel (0) target = $region17
    $region16: #{tpu_custom_call.1} parent=1 // pred_region
      _
    $region17: #{tpu_custom_call.1} parent=1 // pred_fallthru
      _
    // Predicated region
    $region18: #{tpu_custom_call.1} parent=1 // pred_check
      _
    $region19: #{tpu_custom_call.1} parent=1 // pred_check_branch
      %20 = sbr.rel (0) target = $region21
    $region20: #{tpu_custom_call.1} parent=1 // pred_region
      _
    $region21: #{tpu_custom_call.1} parent=1 // pred_fallthru
      _
    %v22 = vld [vmem:[%s0] sm:$0xff]
    %v23 = vld [vmem:[%s0 + $0x8] sm:$0xff]
    %v24 = vld [vmem:[%s0 + $0x10] sm:$0xff]
    %v25 = vld [vmem:[%s0 + $0x18] sm:$0xff]
    %v26 = vld [vmem:[%s0 + $0x20] sm:$0xff]
    %v27 = vld [vmem:[%s0 + $0x28] sm:$0xff]
    %v28 = vld [vmem:[%s0 + $0x30] sm:$0xff]
    %v29 = vld [vmem:[%s0 + $0x38] sm:$0xff]
    %v30 = vld [vmem:[%s0 + $0x40] sm:$0xff]
    %v31 = vld [vmem:[%s0 + $0x48] sm:$0xff]
    %v32 = vld [vmem:[%s0 + $0x50] sm:$0xff]
    %v33 = vld [vmem:[%s0 + $0x58] sm:$0xff]
    %v34 = vld [vmem:[%s0 + $0x60] sm:$0xff]
    %v35 = vld [vmem:[%s0 + $0x68] sm:$0xff]
    %v36 = vpack.c.bf16 %v29, %v22
    %v37 = vpack.c.bf16 %v30, %v23
    %v38 = vpack.c.bf16 %v31, %v24
    %v39 = vpack.c.bf16 %v32, %v25
    %v40 = vpack.c.bf16 %v33, %v26
    %v41 = vpack.c.bf16 %v34, %v27
    %v42 = vpack.c.bf16 %v35, %v28
    %v43 = vld [vmem:[%s1] sm:$0xff]
    %v44 = vld [vmem:[%s1 + $0x8] sm:$0xff]
    %v45 = vld [vmem:[%s1 + $0x10] sm:$0xff]
    %v46 = vld [vmem:[%s1 + $0x18] sm:$0xff]
    %v47 = vld [vmem:[%s1 + $0x20] sm:$0xff]
    %v48 = vld [vmem:[%s1 + $0x28] sm:$0xff]
    %v49 = vld [vmem:[%s1 + $0x30] sm:$0xff]
    %v50 = vld [vmem:[%s1 + $0x38] sm:$0xff]
    %v51 = vld [vmem:[%s1 + $0x40] sm:$0xff]
    %v52 = vld [vmem:[%s1 + $0x48] sm:$0xff]
    %v53 = vld [vmem:[%s1 + $0x50] sm:$0xff]
    %v54 = vld [vmem:[%s1 + $0x58] sm:$0xff]
    %v55 = vld [vmem:[%s1 + $0x60] sm:$0xff]
    %v56 = vld [vmem:[%s1 + $0x68] sm:$0xff]
    %v57 = vld [vmem:[%s1 + $0x70] sm:$0xff]
    %v58 = vld [vmem:[%s1 + $0x78] sm:$0xff]
    %v59 = vld [vmem:[%s1 + $0x80] sm:$0xff]
    %v60 = vld [vmem:[%s1 + $0x88] sm:$0xff]
    %v61 = vld [vmem:[%s1 + $0x90] sm:$0xff]
    %v62 = vld [vmem:[%s1 + $0x98] sm:$0xff]
    %v63 = vld [vmem:[%s1 + $0xa0] sm:$0xff]
    %v64 = vld [vmem:[%s1 + $0xa8] sm:$0xff]
    %v65 = vld [vmem:[%s1 + $0xb0] sm:$0xff]
    %v66 = vld [vmem:[%s1 + $0xb8] sm:$0xff]
    %v67 = vld [vmem:[%s1 + $0xc0] sm:$0xff]
    %v68 = vld [vmem:[%s1 + $0xc8] sm:$0xff]
    %v69 = vld [vmem:[%s1 + $0xd0] sm:$0xff]
    %v70 = vld [vmem:[%s1 + $0xd8] sm:$0xff]
    %v71 = vld [vmem:[%s1 + $0xe0] sm:$0xff]
    %v72 = vld [vmem:[%s1 + $0xe8] sm:$0xff]
    %v73 = vld [vmem:[%s1 + $0xf0] sm:$0xff]
    %v74 = vld [vmem:[%s1 + $0xf8] sm:$0xff]
    %v75 = vld [vmem:[%s1 + $0x100] sm:$0xff]
    %v76 = vld [vmem:[%s1 + $0x108] sm:$0xff]
    %v77 = vld [vmem:[%s1 + $0x110] sm:$0xff]
    %v78 = vld [vmem:[%s1 + $0x118] sm:$0xff]
    %v79 = vld [vmem:[%s1 + $0x120] sm:$0xff]
    %v80 = vld [vmem:[%s1 + $0x128] sm:$0xff]
    %v81 = vld [vmem:[%s1 + $0x130] sm:$0xff]
    %v82 = vld [vmem:[%s1 + $0x138] sm:$0xff]
    %v83 = vld [vmem:[%s1 + $0x140] sm:$0xff]
    %v84 = vld [vmem:[%s1 + $0x148] sm:$0xff]
    %v85 = vld [vmem:[%s1 + $0x150] sm:$0xff]
    %v86 = vld [vmem:[%s1 + $0x158] sm:$0xff]
    %v87 = vld [vmem:[%s1 + $0x160] sm:$0xff]
    %v88 = vld [vmem:[%s1 + $0x168] sm:$0xff]
    %v89 = vld [vmem:[%s1 + $0x170] sm:$0xff]
    %v90 = vld [vmem:[%s1 + $0x178] sm:$0xff]
    %v91 = vld [vmem:[%s1 + $0x180] sm:$0xff]
    %v92 = vld [vmem:[%s1 + $0x188] sm:$0xff]
    %v93 = vld [vmem:[%s1 + $0x190] sm:$0xff]
    %v94 = vld [vmem:[%s1 + $0x198] sm:$0xff]
    %v95 = vld [vmem:[%s1 + $0x1a0] sm:$0xff]
    %v96 = vld [vmem:[%s1 + $0x1a8] sm:$0xff]
    %v97 = vld [vmem:[%s1 + $0x1b0] sm:$0xff]
    %v98 = vld [vmem:[%s1 + $0x1b8] sm:$0xff]
    %v99 = vld [vmem:[%s1 + $0x1c0] sm:$0xff]
    %v100 = vld [vmem:[%s1 + $0x1c8] sm:$0xff]
    %v101 = vld [vmem:[%s1 + $0x1d0] sm:$0xff]
    %v102 = vld [vmem:[%s1 + $0x1d8] sm:$0xff]
    %v103 = vld [vmem:[%s1 + $0x1e0] sm:$0xff]
    %v104 = vld [vmem:[%s1 + $0x1e8] sm:$0xff]
    %v105 = vld [vmem:[%s1 + $0x1f0] sm:$0xff]
    %v106 = vld [vmem:[%s1 + $0x1f8] sm:$0xff]
    %v107 = vld [vmem:[%s1 + $0x200] sm:$0xff]
    %v108 = vld [vmem:[%s1 + $0x208] sm:$0xff]
    %v109 = vld [vmem:[%s1 + $0x210] sm:$0xff]
    %v110 = vld [vmem:[%s1 + $0x218] sm:$0xff]
    %v111 = vld [vmem:[%s1 + $0x220] sm:$0xff]
    %v112 = vld [vmem:[%s1 + $0x228] sm:$0xff]
    %v113 = vld [vmem:[%s1 + $0x230] sm:$0xff]
    %v114 = vld [vmem:[%s1 + $0x238] sm:$0xff]
    %v115 = vld [vmem:[%s1 + $0x240] sm:$0xff]
    %v116 = vld [vmem:[%s1 + $0x248] sm:$0xff]
    %v117 = vld [vmem:[%s1 + $0x250] sm:$0xff]
    %v118 = vld [vmem:[%s1 + $0x258] sm:$0xff]
    %v119 = vld [vmem:[%s1 + $0x260] sm:$0xff]
    %v120 = vld [vmem:[%s1 + $0x268] sm:$0xff]
    %v121 = vld [vmem:[%s1 + $0x270] sm:$0xff]
    %v122 = vld [vmem:[%s1 + $0x278] sm:$0xff]
    %v123 = vld [vmem:[%s1 + $0x280] sm:$0xff]
    %v124 = vld [vmem:[%s1 + $0x288] sm:$0xff]
    %v125 = vld [vmem:[%s1 + $0x290] sm:$0xff]
    %v126 = vld [vmem:[%s1 + $0x298] sm:$0xff]
    %v127 = vld [vmem:[%s1 + $0x2a0] sm:$0xff]
    %v128 = vld [vmem:[%s1 + $0x2a8] sm:$0xff]
    %v129 = vld [vmem:[%s1 + $0x2b0] sm:$0xff]
    %v130 = vld [vmem:[%s1 + $0x2b8] sm:$0xff]
    %v131 = vld [vmem:[%s1 + $0x2c0] sm:$0xff]
    %v132 = vld [vmem:[%s1 + $0x2c8] sm:$0xff]
    %v133 = vld [vmem:[%s1 + $0x2d0] sm:$0xff]
    %v134 = vld [vmem:[%s1 + $0x2d8] sm:$0xff]
    %v135 = vld [vmem:[%s1 + $0x2e0] sm:$0xff]
    %v136 = vld [vmem:[%s1 + $0x2e8] sm:$0xff]
    %v137 = vld [vmem:[%s1 + $0x2f0] sm:$0xff]
    %v138 = vld [vmem:[%s1 + $0x2f8] sm:$0xff]
    %v139 = vld [vmem:[%s1 + $0x300] sm:$0xff]
    %v140 = vld [vmem:[%s1 + $0x308] sm:$0xff]
    %v141 = vld [vmem:[%s1 + $0x310] sm:$0xff]
    %v142 = vld [vmem:[%s1 + $0x318] sm:$0xff]
    %v143 = vld [vmem:[%s1 + $0x320] sm:$0xff]
    %v144 = vld [vmem:[%s1 + $0x328] sm:$0xff]
    %v145 = vld [vmem:[%s1 + $0x330] sm:$0xff]
    %v146 = vld [vmem:[%s1 + $0x338] sm:$0xff]
    %v147 = vld [vmem:[%s1 + $0x340] sm:$0xff]
    %v148 = vld [vmem:[%s1 + $0x348] sm:$0xff]
    %v149 = vld [vmem:[%s1 + $0x350] sm:$0xff]
    %v150 = vld [vmem:[%s1 + $0x358] sm:$0xff]
    %v151 = vld [vmem:[%s1 + $0x360] sm:$0xff]
    %v152 = vld [vmem:[%s1 + $0x368] sm:$0xff]
    %v153 = vld [vmem:[%s1 + $0x370] sm:$0xff]
    %v154 = vld [vmem:[%s1 + $0x378] sm:$0xff]
    %v155 = vld [vmem:[%s1 + $0x380] sm:$0xff]
    %v156 = vld [vmem:[%s1 + $0x388] sm:$0xff]
    %v157 = vld [vmem:[%s1 + $0x390] sm:$0xff]
    %v158 = vld [vmem:[%s1 + $0x398] sm:$0xff]
    %v159 = vld [vmem:[%s1 + $0x3a0] sm:$0xff]
    %v160 = vld [vmem:[%s1 + $0x3a8] sm:$0xff]
    %v161 = vld [vmem:[%s1 + $0x3b0] sm:$0xff]
    %v162 = vld [vmem:[%s1 + $0x3b8] sm:$0xff]
    %v163 = vld [vmem:[%s1 + $0x3c0] sm:$0xff]
    %v164 = vld [vmem:[%s1 + $0x3c8] sm:$0xff]
    %v165 = vld [vmem:[%s1 + $0x3d0] sm:$0xff]
    %v166 = vld [vmem:[%s1 + $0x3d8] sm:$0xff]
    %v167 = vld [vmem:[%s1 + $0x3e0] sm:$0xff]
    %v168 = vld [vmem:[%s1 + $0x3e8] sm:$0xff]
    %v169 = vld [vmem:[%s1 + $0x3f0] sm:$0xff]
    %v170 = vld [vmem:[%s1 + $0x3f8] sm:$0xff]
    %v171 = vld [vmem:[%s1 + $0x400] sm:$0xff]
    %v172 = vld [vmem:[%s1 + $0x408] sm:$0xff]
    %v173 = vld [vmem:[%s1 + $0x410] sm:$0xff]
    %v174 = vld [vmem:[%s1 + $0x418] sm:$0xff]
    %v175 = vld [vmem:[%s1 + $0x420] sm:$0xff]
    %v176 = vld [vmem:[%s1 + $0x428] sm:$0xff]
    %v177 = vld [vmem:[%s1 + $0x430] sm:$0xff]
    %v178 = vld [vmem:[%s1 + $0x438] sm:$0xff]
    %v179 = vld [vmem:[%s1 + $0x440] sm:$0xff]
    %v180 = vld [vmem:[%s1 + $0x448] sm:$0xff]
    %v181 = vld [vmem:[%s1 + $0x450] sm:$0xff]
    %v182 = vld [vmem:[%s1 + $0x458] sm:$0xff]
    %v183 = vld [vmem:[%s1 + $0x460] sm:$0xff]
    %v184 = vld [vmem:[%s1 + $0x468] sm:$0xff]
    %v185 = vld [vmem:[%s1 + $0x470] sm:$0xff]
    %v186 = vld [vmem:[%s1 + $0x478] sm:$0xff]
    %v187 = vld [vmem:[%s1 + $0x480] sm:$0xff]
    %v188 = vld [vmem:[%s1 + $0x488] sm:$0xff]
    %v189 = vld [vmem:[%s1 + $0x490] sm:$0xff]
    %v190 = vld [vmem:[%s1 + $0x498] sm:$0xff]
    %v191 = vld [vmem:[%s1 + $0x4a0] sm:$0xff]
    %v192 = vld [vmem:[%s1 + $0x4a8] sm:$0xff]
    %v193 = vld [vmem:[%s1 + $0x4b0] sm:$0xff]
    %v194 = vld [vmem:[%s1 + $0x4b8] sm:$0xff]
    %v195 = vld [vmem:[%s1 + $0x4c0] sm:$0xff]
    %v196 = vld [vmem:[%s1 + $0x4c8] sm:$0xff]
    %v197 = vld [vmem:[%s1 + $0x4d0] sm:$0xff]
    %v198 = vld [vmem:[%s1 + $0x4d8] sm:$0xff]
    %v199 = vld [vmem:[%s1 + $0x4e0] sm:$0xff]
    %v200 = vld [vmem:[%s1 + $0x4e8] sm:$0xff]
    %v201 = vld [vmem:[%s1 + $0x4f0] sm:$0xff]
    %v202 = vld [vmem:[%s1 + $0x4f8] sm:$0xff]
    %v203 = vld [vmem:[%s1 + $0x500] sm:$0xff]
    %v204 = vld [vmem:[%s1 + $0x508] sm:$0xff]
    %v205 = vld [vmem:[%s1 + $0x510] sm:$0xff]
    %v206 = vld [vmem:[%s1 + $0x518] sm:$0xff]
    %v207 = vld [vmem:[%s1 + $0x520] sm:$0xff]
    %v208 = vld [vmem:[%s1 + $0x528] sm:$0xff]
    %v209 = vld [vmem:[%s1 + $0x530] sm:$0xff]
    %v210 = vld [vmem:[%s1 + $0x538] sm:$0xff]
    %v211 = vld [vmem:[%s1 + $0x540] sm:$0xff]
    %v212 = vld [vmem:[%s1 + $0x548] sm:$0xff]
    %v213 = vld [vmem:[%s1 + $0x550] sm:$0xff]
    %v214 = vld [vmem:[%s1 + $0x558] sm:$0xff]
    %v215 = vld [vmem:[%s1 + $0x560] sm:$0xff]
    %v216 = vld [vmem:[%s1 + $0x568] sm:$0xff]
    %v217 = vld [vmem:[%s1 + $0x570] sm:$0xff]
    %v218 = vld [vmem:[%s1 + $0x578] sm:$0xff]
    %v219 = vld [vmem:[%s1 + $0x580] sm:$0xff]
    %v220 = vld [vmem:[%s1 + $0x588] sm:$0xff]
    %v221 = vld [vmem:[%s1 + $0x590] sm:$0xff]
    %v222 = vld [vmem:[%s1 + $0x598] sm:$0xff]
    %v223 = vld [vmem:[%s1 + $0x5a0] sm:$0xff]
    %v224 = vld [vmem:[%s1 + $0x5a8] sm:$0xff]
    %v225 = vld [vmem:[%s1 + $0x5b0] sm:$0xff]
    %v226 = vld [vmem:[%s1 + $0x5b8] sm:$0xff]
    %v227 = vld [vmem:[%s1 + $0x5c0] sm:$0xff]
    %v228 = vld [vmem:[%s1 + $0x5c8] sm:$0xff]
    %v229 = vld [vmem:[%s1 + $0x5d0] sm:$0xff]
    %v230 = vld [vmem:[%s1 + $0x5d8] sm:$0xff]
    %v231 = vld [vmem:[%s1 + $0x5e0] sm:$0xff]
    %v232 = vld [vmem:[%s1 + $0x5e8] sm:$0xff]
    %v233 = vld [vmem:[%s1 + $0x5f0] sm:$0xff]
    %v234 = vld [vmem:[%s1 + $0x5f8] sm:$0xff]
    %v235 = vld [vmem:[%s1 + $0x600] sm:$0xff]
    %v236 = vld [vmem:[%s1 + $0x608] sm:$0xff]
    %v237 = vld [vmem:[%s1 + $0x610] sm:$0xff]
    %v238 = vld [vmem:[%s1 + $0x618] sm:$0xff]
    %v239 = vld [vmem:[%s2] sm:$0xf]
    %v241 = vlaneseq
    %v242 = vshrl.u32 %v241, 7
    %v243 = vsub.s32 0, %v242
    %v244 = vrot.slane %v239, %v243
    %v245 = vlaneseq
    %v246 = vshrl.u32 %v245, 7
    %v247 = vsub.s32 1, %v246
    %v248 = vrot.slane %v239, %v247
    %v249 = vlaneseq
    %v250 = vshrl.u32 %v249, 7
    %v251 = vsub.s32 2, %v250
    %v252 = vrot.slane %v239, %v251
    %v253 = vlaneseq
    %v254 = vshrl.u32 %v253, 7
    %v255 = vsub.s32 3, %v254
    %v256 = vrot.slane %v239, %v255
    %v457 = vunpack.c.l.b16 %v43
    %v458 = vunpack.c.h.b16 %v43
    %v459 = vunpack.c.l.b16 %v44
    %v460 = vunpack.c.h.b16 %v44
    %v461 = vunpack.c.l.b16 %v45
    %v462 = vunpack.c.h.b16 %v45
    %v463 = vunpack.c.l.b16 %v46
    %v464 = vunpack.c.h.b16 %v46
    %v465 = vunpack.c.l.b16 %v47
    %v466 = vunpack.c.h.b16 %v47
    %v467 = vunpack.c.l.b16 %v48
    %v468 = vunpack.c.h.b16 %v48
    %v469 = vunpack.c.l.b16 %v49
    %v470 = vunpack.c.h.b16 %v49
    %v471 = vunpack.c.l.b16 %v50
    %v472 = vunpack.c.h.b16 %v50
    %v473 = vunpack.c.l.b16 %v51
    %v474 = vunpack.c.h.b16 %v51
    %v475 = vunpack.c.l.b16 %v52
    %v476 = vunpack.c.h.b16 %v52
    %v477 = vunpack.c.l.b16 %v53
    %v478 = vunpack.c.h.b16 %v53
    %v479 = vunpack.c.l.b16 %v54
    %v480 = vunpack.c.h.b16 %v54
    %v481 = vunpack.c.l.b16 %v55
    %v482 = vunpack.c.h.b16 %v55
    %v483 = vunpack.c.l.b16 %v56
    %v484 = vunpack.c.h.b16 %v56
    %v485 = vunpack.c.l.b16 %v57
    %v486 = vunpack.c.h.b16 %v57
    %v487 = vunpack.c.l.b16 %v58
    %v488 = vunpack.c.h.b16 %v58
    %v489 = vunpack.c.l.b16 %v59
    %v490 = vunpack.c.h.b16 %v59
    %v491 = vunpack.c.l.b16 %v60
    %v492 = vunpack.c.h.b16 %v60
    %v493 = vunpack.c.l.b16 %v61
    %v494 = vunpack.c.h.b16 %v61
    %v495 = vunpack.c.l.b16 %v62
    %v496 = vunpack.c.h.b16 %v62
    %v497 = vunpack.c.l.b16 %v63
    %v498 = vunpack.c.h.b16 %v63
    %v499 = vunpack.c.l.b16 %v64
    %v500 = vunpack.c.h.b16 %v64
    %v501 = vunpack.c.l.b16 %v65
    %v502 = vunpack.c.h.b16 %v65
    %v503 = vunpack.c.l.b16 %v66
    %v504 = vunpack.c.h.b16 %v66
    %v505 = vunpack.c.l.b16 %v67
    %v506 = vunpack.c.h.b16 %v67
    %v507 = vunpack.c.l.b16 %v68
    %v508 = vunpack.c.h.b16 %v68
    %v509 = vunpack.c.l.b16 %v69
    %v510 = vunpack.c.h.b16 %v69
    %v511 = vunpack.c.l.b16 %v70
    %v512 = vunpack.c.h.b16 %v70
    %v513 = vunpack.c.l.b16 %v71
    %v514 = vunpack.c.h.b16 %v71
    %v515 = vunpack.c.l.b16 %v72
    %v516 = vunpack.c.h.b16 %v72
    %v517 = vunpack.c.l.b16 %v73
    %v518 = vunpack.c.h.b16 %v73
    %v519 = vunpack.c.l.b16 %v74
    %v520 = vunpack.c.h.b16 %v74
    %v521 = vunpack.c.l.b16 %v75
    %v522 = vunpack.c.h.b16 %v75
    %v523 = vunpack.c.l.b16 %v76
    %v524 = vunpack.c.h.b16 %v76
    %v525 = vunpack.c.l.b16 %v77
    %v526 = vunpack.c.h.b16 %v77
    %v527 = vunpack.c.l.b16 %v78
    %v528 = vunpack.c.h.b16 %v78
    %v529 = vunpack.c.l.b16 %v79
    %v530 = vunpack.c.h.b16 %v79
    %v531 = vunpack.c.l.b16 %v80
    %v532 = vunpack.c.h.b16 %v80
    %v533 = vunpack.c.l.b16 %v81
    %v534 = vunpack.c.h.b16 %v81
    %v535 = vunpack.c.l.b16 %v82
    %v536 = vunpack.c.h.b16 %v82
    %v537 = vunpack.c.l.b16 %v83
    %v538 = vunpack.c.h.b16 %v83
    %v539 = vunpack.c.l.b16 %v84
    %v540 = vunpack.c.h.b16 %v84
    %v541 = vunpack.c.l.b16 %v85
    %v542 = vunpack.c.h.b16 %v85
    %v543 = vunpack.c.l.b16 %v86
    %v544 = vunpack.c.h.b16 %v86
    %v545 = vunpack.c.l.b16 %v87
    %v546 = vunpack.c.h.b16 %v87
    %v547 = vunpack.c.l.b16 %v88
    %v548 = vunpack.c.h.b16 %v88
    %v549 = vunpack.c.l.b16 %v89
    %v550 = vunpack.c.h.b16 %v89
    %v551 = vunpack.c.l.b16 %v90
    %v552 = vunpack.c.h.b16 %v90
    %v553 = vunpack.c.l.b16 %v91
    %v554 = vunpack.c.h.b16 %v91
    %v555 = vunpack.c.l.b16 %v92
    %v556 = vunpack.c.h.b16 %v92
    %v557 = vunpack.c.l.b16 %v93
    %v558 = vunpack.c.h.b16 %v93
    %v559 = vunpack.c.l.b16 %v94
    %v560 = vunpack.c.h.b16 %v94
    %v561 = vunpack.c.l.b16 %v95
    %v562 = vunpack.c.h.b16 %v95
    %v563 = vunpack.c.l.b16 %v96
    %v564 = vunpack.c.h.b16 %v96
    %v565 = vunpack.c.l.b16 %v97
    %v566 = vunpack.c.h.b16 %v97
    %v567 = vunpack.c.l.b16 %v98
    %v568 = vunpack.c.h.b16 %v98
    %v569 = vunpack.c.l.b16 %v99
    %v570 = vunpack.c.h.b16 %v99
    %v571 = vunpack.c.l.b16 %v100
    %v572 = vunpack.c.h.b16 %v100
    %v573 = vunpack.c.l.b16 %v101
    %v574 = vunpack.c.h.b16 %v101
    %v575 = vunpack.c.l.b16 %v102
    %v576 = vunpack.c.h.b16 %v102
    %v577 = vunpack.c.l.b16 %v103
    %v578 = vunpack.c.h.b16 %v103
    %v579 = vunpack.c.l.b16 %v104
    %v580 = vunpack.c.h.b16 %v104
    %v581 = vunpack.c.l.b16 %v105
    %v582 = vunpack.c.h.b16 %v105
    %v583 = vunpack.c.l.b16 %v106
    %v584 = vunpack.c.h.b16 %v106
    %v585 = vunpack.c.l.b16 %v107
    %v586 = vunpack.c.h.b16 %v107
    %v587 = vunpack.c.l.b16 %v108
    %v588 = vunpack.c.h.b16 %v108
    %v589 = vunpack.c.l.b16 %v109
    %v590 = vunpack.c.h.b16 %v109
    %v591 = vunpack.c.l.b16 %v110
    %v592 = vunpack.c.h.b16 %v110
    %v593 = vunpack.c.l.b16 %v111
    %v594 = vunpack.c.h.b16 %v111
    %v595 = vunpack.c.l.b16 %v112
    %v596 = vunpack.c.h.b16 %v112
    %v597 = vunpack.c.l.b16 %v113
    %v598 = vunpack.c.h.b16 %v113
    %v599 = vunpack.c.l.b16 %v114
    %v600 = vunpack.c.h.b16 %v114
    %v601 = vunpack.c.l.b16 %v115
    %v602 = vunpack.c.h.b16 %v115
    %v603 = vunpack.c.l.b16 %v116
    %v604 = vunpack.c.h.b16 %v116
    %v605 = vunpack.c.l.b16 %v117
    %v606 = vunpack.c.h.b16 %v117
    %v607 = vunpack.c.l.b16 %v118
    %v608 = vunpack.c.h.b16 %v118
    %v609 = vunpack.c.l.b16 %v119
    %v610 = vunpack.c.h.b16 %v119
    %v611 = vunpack.c.l.b16 %v120
    %v612 = vunpack.c.h.b16 %v120
    %v613 = vunpack.c.l.b16 %v121
    %v614 = vunpack.c.h.b16 %v121
    %v615 = vunpack.c.l.b16 %v122
    %v616 = vunpack.c.h.b16 %v122
    %v617 = vunpack.c.l.b16 %v123
    %v618 = vunpack.c.h.b16 %v123
    %v619 = vunpack.c.l.b16 %v124
    %v620 = vunpack.c.h.b16 %v124
    %v621 = vunpack.c.l.b16 %v125
    %v622 = vunpack.c.h.b16 %v125
    %v623 = vunpack.c.l.b16 %v126
    %v624 = vunpack.c.h.b16 %v126
    %v625 = vunpack.c.l.b16 %v127
    %v626 = vunpack.c.h.b16 %v127
    %v627 = vunpack.c.l.b16 %v128
    %v628 = vunpack.c.h.b16 %v128
    %v629 = vunpack.c.l.b16 %v129
    %v630 = vunpack.c.h.b16 %v129
    %v631 = vunpack.c.l.b16 %v130
    %v632 = vunpack.c.h.b16 %v130
    %v633 = vunpack.c.l.b16 %v131
    %v634 = vunpack.c.h.b16 %v131
    %v635 = vunpack.c.l.b16 %v132
    %v636 = vunpack.c.h.b16 %v132
    %v637 = vunpack.c.l.b16 %v133
    %v638 = vunpack.c.h.b16 %v133
    %v639 = vunpack.c.l.b16 %v134
    %v640 = vunpack.c.h.b16 %v134
    %v641 = vunpack.c.l.b16 %v135
    %v642 = vunpack.c.h.b16 %v135
    %v643 = vunpack.c.l.b16 %v136
    %v644 = vunpack.c.h.b16 %v136
    %v645 = vunpack.c.l.b16 %v137
    %v646 = vunpack.c.h.b16 %v137
    %v647 = vunpack.c.l.b16 %v138
    %v648 = vunpack.c.h.b16 %v138
    %v649 = vunpack.c.l.b16 %v139
    %v650 = vunpack.c.h.b16 %v139
    %v651 = vunpack.c.l.b16 %v140
    %v652 = vunpack.c.h.b16 %v140
    %v653 = vunpack.c.l.b16 %v141
    %v654 = vunpack.c.h.b16 %v141
    %v655 = vunpack.c.l.b16 %v142
    %v656 = vunpack.c.h.b16 %v142
    %v657 = vunpack.c.l.b16 %v143
    %v658 = vunpack.c.h.b16 %v143
    %v659 = vunpack.c.l.b16 %v144
    %v660 = vunpack.c.h.b16 %v144
    %v661 = vunpack.c.l.b16 %v145
    %v662 = vunpack.c.h.b16 %v145
    %v663 = vunpack.c.l.b16 %v146
    %v664 = vunpack.c.h.b16 %v146
    %v665 = vunpack.c.l.b16 %v147
    %v666 = vunpack.c.h.b16 %v147
    %v667 = vunpack.c.l.b16 %v148
    %v668 = vunpack.c.h.b16 %v148
    %v669 = vunpack.c.l.b16 %v149
    %v670 = vunpack.c.h.b16 %v149
    %v671 = vunpack.c.l.b16 %v150
    %v672 = vunpack.c.h.b16 %v150
    %v673 = vunpack.c.l.b16 %v151
    %v674 = vunpack.c.h.b16 %v151
    %v675 = vunpack.c.l.b16 %v152
    %v676 = vunpack.c.h.b16 %v152
    %v677 = vunpack.c.l.b16 %v153
    %v678 = vunpack.c.h.b16 %v153
    %v679 = vunpack.c.l.b16 %v154
    %v680 = vunpack.c.h.b16 %v154
    %v681 = vunpack.c.l.b16 %v155
    %v682 = vunpack.c.h.b16 %v155
    %v683 = vunpack.c.l.b16 %v156
    %v684 = vunpack.c.h.b16 %v156
    %v685 = vunpack.c.l.b16 %v157
    %v686 = vunpack.c.h.b16 %v157
    %v687 = vunpack.c.l.b16 %v158
    %v688 = vunpack.c.h.b16 %v158
    %v689 = vunpack.c.l.b16 %v159
    %v690 = vunpack.c.h.b16 %v159
    %v691 = vunpack.c.l.b16 %v160
    %v692 = vunpack.c.h.b16 %v160
    %v693 = vunpack.c.l.b16 %v161
    %v694 = vunpack.c.h.b16 %v161
    %v695 = vunpack.c.l.b16 %v162
    %v696 = vunpack.c.h.b16 %v162
    %v697 = vunpack.c.l.b16 %v163
    %v698 = vunpack.c.h.b16 %v163
    %v699 = vunpack.c.l.b16 %v164
    %v700 = vunpack.c.h.b16 %v164
    %v701 = vunpack.c.l.b16 %v165
    %v702 = vunpack.c.h.b16 %v165
    %v703 = vunpack.c.l.b16 %v166
    %v704 = vunpack.c.h.b16 %v166
    %v705 = vunpack.c.l.b16 %v167
    %v706 = vunpack.c.h.b16 %v167
    %v707 = vunpack.c.l.b16 %v168
    %v708 = vunpack.c.h.b16 %v168
    %v709 = vunpack.c.l.b16 %v169
    %v710 = vunpack.c.h.b16 %v169
    %v711 = vunpack.c.l.b16 %v170
    %v712 = vunpack.c.h.b16 %v170
    %v713 = vunpack.c.l.b16 %v171
    %v714 = vunpack.c.h.b16 %v171
    %v715 = vunpack.c.l.b16 %v172
    %v716 = vunpack.c.h.b16 %v172
    %v717 = vunpack.c.l.b16 %v173
    %v718 = vunpack.c.h.b16 %v173
    %v719 = vunpack.c.l.b16 %v174
    %v720 = vunpack.c.h.b16 %v174
    %v721 = vunpack.c.l.b16 %v175
    %v722 = vunpack.c.h.b16 %v175
    %v723 = vunpack.c.l.b16 %v176
    %v724 = vunpack.c.h.b16 %v176
    %v725 = vunpack.c.l.b16 %v177
    %v726 = vunpack.c.h.b16 %v177
    %v727 = vunpack.c.l.b16 %v178
    %v728 = vunpack.c.h.b16 %v178
    %v729 = vunpack.c.l.b16 %v179
    %v730 = vunpack.c.h.b16 %v179
    %v731 = vunpack.c.l.b16 %v180
    %v732 = vunpack.c.h.b16 %v180
    %v733 = vunpack.c.l.b16 %v181
    %v734 = vunpack.c.h.b16 %v181
    %v735 = vunpack.c.l.b16 %v182
    %v736 = vunpack.c.h.b16 %v182
    %v737 = vunpack.c.l.b16 %v183
    %v738 = vunpack.c.h.b16 %v183
    %v739 = vunpack.c.l.b16 %v184
    %v740 = vunpack.c.h.b16 %v184
    %v741 = vunpack.c.l.b16 %v185
    %v742 = vunpack.c.h.b16 %v185
    %v743 = vunpack.c.l.b16 %v186
    %v744 = vunpack.c.h.b16 %v186
    %v745 = vunpack.c.l.b16 %v187
    %v746 = vunpack.c.h.b16 %v187
    %v747 = vunpack.c.l.b16 %v188
    %v748 = vunpack.c.h.b16 %v188
    %v749 = vunpack.c.l.b16 %v189
    %v750 = vunpack.c.h.b16 %v189
    %v751 = vunpack.c.l.b16 %v190
    %v752 = vunpack.c.h.b16 %v190
    %v753 = vunpack.c.l.b16 %v191
    %v754 = vunpack.c.h.b16 %v191
    %v755 = vunpack.c.l.b16 %v192
    %v756 = vunpack.c.h.b16 %v192
    %v757 = vunpack.c.l.b16 %v193
    %v758 = vunpack.c.h.b16 %v193
    %v759 = vunpack.c.l.b16 %v194
    %v760 = vunpack.c.h.b16 %v194
    %v761 = vunpack.c.l.b16 %v195
    %v762 = vunpack.c.h.b16 %v195
    %v763 = vunpack.c.l.b16 %v196
    %v764 = vunpack.c.h.b16 %v196
    %v765 = vunpack.c.l.b16 %v197
    %v766 = vunpack.c.h.b16 %v197
    %v767 = vunpack.c.l.b16 %v198
    %v768 = vunpack.c.h.b16 %v198
    %v769 = vunpack.c.l.b16 %v199
    %v770 = vunpack.c.h.b16 %v199
    %v771 = vunpack.c.l.b16 %v200
    %v772 = vunpack.c.h.b16 %v200
    %v773 = vunpack.c.l.b16 %v201
    %v774 = vunpack.c.h.b16 %v201
    %v775 = vunpack.c.l.b16 %v202
    %v776 = vunpack.c.h.b16 %v202
    %v777 = vunpack.c.l.b16 %v203
    %v778 = vunpack.c.h.b16 %v203
    %v779 = vunpack.c.l.b16 %v204
    %v780 = vunpack.c.h.b16 %v204
    %v781 = vunpack.c.l.b16 %v205
    %v782 = vunpack.c.h.b16 %v205
    %v783 = vunpack.c.l.b16 %v206
    %v784 = vunpack.c.h.b16 %v206
    %v785 = vunpack.c.l.b16 %v207
    %v786 = vunpack.c.h.b16 %v207
    %v787 = vunpack.c.l.b16 %v208
    %v788 = vunpack.c.h.b16 %v208
    %v789 = vunpack.c.l.b16 %v209
    %v790 = vunpack.c.h.b16 %v209
    %v791 = vunpack.c.l.b16 %v210
    %v792 = vunpack.c.h.b16 %v210
    %v793 = vunpack.c.l.b16 %v211
    %v794 = vunpack.c.h.b16 %v211
    %v795 = vunpack.c.l.b16 %v212
    %v796 = vunpack.c.h.b16 %v212
    %v797 = vunpack.c.l.b16 %v213
    %v798 = vunpack.c.h.b16 %v213
    %v799 = vunpack.c.l.b16 %v214
    %v800 = vunpack.c.h.b16 %v214
    %v801 = vunpack.c.l.b16 %v215
    %v802 = vunpack.c.h.b16 %v215
    %v803 = vunpack.c.l.b16 %v216
    %v804 = vunpack.c.h.b16 %v216
    %v805 = vunpack.c.l.b16 %v217
    %v806 = vunpack.c.h.b16 %v217
    %v807 = vunpack.c.l.b16 %v218
    %v808 = vunpack.c.h.b16 %v218
    %v809 = vunpack.c.l.b16 %v219
    %v810 = vunpack.c.h.b16 %v219
    %v811 = vunpack.c.l.b16 %v220
    %v812 = vunpack.c.h.b16 %v220
    %v813 = vunpack.c.l.b16 %v221
    %v814 = vunpack.c.h.b16 %v221
    %v815 = vunpack.c.l.b16 %v222
    %v816 = vunpack.c.h.b16 %v222
    %v817 = vunpack.c.l.b16 %v223
    %v818 = vunpack.c.h.b16 %v223
    %v819 = vunpack.c.l.b16 %v224
    %v820 = vunpack.c.h.b16 %v224
    %v821 = vunpack.c.l.b16 %v225
    %v822 = vunpack.c.h.b16 %v225
    %v823 = vunpack.c.l.b16 %v226
    %v824 = vunpack.c.h.b16 %v226
    %v825 = vunpack.c.l.b16 %v227
    %v826 = vunpack.c.h.b16 %v227
    %v827 = vunpack.c.l.b16 %v228
    %v828 = vunpack.c.h.b16 %v228
    %v829 = vunpack.c.l.b16 %v229
    %v830 = vunpack.c.h.b16 %v229
    %v831 = vunpack.c.l.b16 %v230
    %v832 = vunpack.c.h.b16 %v230
    %v833 = vunpack.c.l.b16 %v231
    %v834 = vunpack.c.h.b16 %v231
    %v835 = vunpack.c.l.b16 %v232
    %v836 = vunpack.c.h.b16 %v232
    %v837 = vunpack.c.l.b16 %v233
    %v838 = vunpack.c.h.b16 %v233
    %v839 = vunpack.c.l.b16 %v234
    %v840 = vunpack.c.h.b16 %v234
    %v841 = vunpack.c.l.b16 %v235
    %v842 = vunpack.c.h.b16 %v235
    %v843 = vunpack.c.l.b16 %v236
    %v844 = vunpack.c.h.b16 %v236
    %v845 = vunpack.c.l.b16 %v237
    %v846 = vunpack.c.h.b16 %v237
    %v847 = vunpack.c.l.b16 %v238
    %v848 = vunpack.c.h.b16 %v238
    %v849 = vpack.c.b16 %v461, %v457
    %v850 = vpack.c.b16 %v462, %v458
    %v851 = vpack.c.b16 %v463, %v459
    %v852 = vpack.c.b16 %v464, %v460
    %v853 = vpack.c.b16 %v469, %v465
    %v854 = vpack.c.b16 %v470, %v466
    %v855 = vpack.c.b16 %v471, %v467
    %v856 = vpack.c.b16 %v472, %v468
    %v857 = vpack.c.b16 %v477, %v473
    %v858 = vpack.c.b16 %v478, %v474
    %v859 = vpack.c.b16 %v479, %v475
    %v860 = vpack.c.b16 %v480, %v476
    %v861 = vpack.c.b16 %v485, %v481
    %v862 = vpack.c.b16 %v486, %v482
    %v863 = vpack.c.b16 %v487, %v483
    %v864 = vpack.c.b16 %v488, %v484
    %v865 = vpack.c.b16 %v493, %v489
    %v866 = vpack.c.b16 %v494, %v490
    %v867 = vpack.c.b16 %v495, %v491
    %v868 = vpack.c.b16 %v496, %v492
    %v869 = vpack.c.b16 %v501, %v497
    %v870 = vpack.c.b16 %v502, %v498
    %v871 = vpack.c.b16 %v503, %v499
    %v872 = vpack.c.b16 %v504, %v500
    %v873 = vpack.c.b16 %v509, %v505
    %v874 = vpack.c.b16 %v510, %v506
    %v875 = vpack.c.b16 %v511, %v507
    %v876 = vpack.c.b16 %v512, %v508
    %v877 = vpack.c.b16 %v517, %v513
    %v878 = vpack.c.b16 %v518, %v514
    %v879 = vpack.c.b16 %v519, %v515
    %v880 = vpack.c.b16 %v520, %v516
    %v881 = vpack.c.b16 %v525, %v521
    %v882 = vpack.c.b16 %v526, %v522
    %v883 = vpack.c.b16 %v527, %v523
    %v884 = vpack.c.b16 %v528, %v524
    %v885 = vpack.c.b16 %v533, %v529
    %v886 = vpack.c.b16 %v534, %v530
    %v887 = vpack.c.b16 %v535, %v531
    %v888 = vpack.c.b16 %v536, %v532
    %v889 = vpack.c.b16 %v541, %v537
    %v890 = vpack.c.b16 %v542, %v538
    %v891 = vpack.c.b16 %v543, %v539
    %v892 = vpack.c.b16 %v544, %v540
    %v893 = vpack.c.b16 %v549, %v545
    %v894 = vpack.c.b16 %v550, %v546
    %v895 = vpack.c.b16 %v551, %v547
    %v896 = vpack.c.b16 %v552, %v548
    %v897 = vpack.c.b16 %v557, %v553
    %v898 = vpack.c.b16 %v558, %v554
    %v899 = vpack.c.b16 %v559, %v555
    %v900 = vpack.c.b16 %v560, %v556
    %v901 = vpack.c.b16 %v565, %v561
    %v902 = vpack.c.b16 %v566, %v562
    %v903 = vpack.c.b16 %v567, %v563
    %v904 = vpack.c.b16 %v568, %v564
    %v905 = vpack.c.b16 %v573, %v569
    %v906 = vpack.c.b16 %v574, %v570
    %v907 = vpack.c.b16 %v575, %v571
    %v908 = vpack.c.b16 %v576, %v572
    %v909 = vpack.c.b16 %v581, %v577
    %v910 = vpack.c.b16 %v582, %v578
    %v911 = vpack.c.b16 %v583, %v579
    %v912 = vpack.c.b16 %v584, %v580
    %v913 = vpack.c.b16 %v589, %v585
    %v914 = vpack.c.b16 %v590, %v586
    %v915 = vpack.c.b16 %v591, %v587
    %v916 = vpack.c.b16 %v592, %v588
    %v917 = vpack.c.b16 %v597, %v593
    %v918 = vpack.c.b16 %v598, %v594
    %v919 = vpack.c.b16 %v599, %v595
    %v920 = vpack.c.b16 %v600, %v596
    %v921 = vpack.c.b16 %v605, %v601
    %v922 = vpack.c.b16 %v606, %v602
    %v923 = vpack.c.b16 %v607, %v603
    %v924 = vpack.c.b16 %v608, %v604
    %v925 = vpack.c.b16 %v613, %v609
    %v926 = vpack.c.b16 %v614, %v610
    %v927 = vpack.c.b16 %v615, %v611
    %v928 = vpack.c.b16 %v616, %v612
    %v929 = vpack.c.b16 %v621, %v617
    %v930 = vpack.c.b16 %v622, %v618
    %v931 = vpack.c.b16 %v623, %v619
    %v932 = vpack.c.b16 %v624, %v620
    %v933 = vpack.c.b16 %v629, %v625
    %v934 = vpack.c.b16 %v630, %v626
    %v935 = vpack.c.b16 %v631, %v627
    %v936 = vpack.c.b16 %v632, %v628
    %v937 = vpack.c.b16 %v637, %v633
    %v938 = vpack.c.b16 %v638, %v634
    %v939 = vpack.c.b16 %v639, %v635
    %v940 = vpack.c.b16 %v640, %v636
    %v941 = vpack.c.b16 %v645, %v641
    %v942 = vpack.c.b16 %v646, %v642
    %v943 = vpack.c.b16 %v647, %v643
    %v944 = vpack.c.b16 %v648, %v644
    %v945 = vpack.c.b16 %v653, %v649
    %v946 = vpack.c.b16 %v654, %v650
    %v947 = vpack.c.b16 %v655, %v651
    %v948 = vpack.c.b16 %v656, %v652
    %v949 = vpack.c.b16 %v661, %v657
    %v950 = vpack.c.b16 %v662, %v658
    %v951 = vpack.c.b16 %v663, %v659
    %v952 = vpack.c.b16 %v664, %v660
    %v953 = vpack.c.b16 %v669, %v665
    %v954 = vpack.c.b16 %v670, %v666
    %v955 = vpack.c.b16 %v671, %v667
    %v956 = vpack.c.b16 %v672, %v668
    %v957 = vpack.c.b16 %v677, %v673
    %v958 = vpack.c.b16 %v678, %v674
    %v959 = vpack.c.b16 %v679, %v675
    %v960 = vpack.c.b16 %v680, %v676
    %v961 = vpack.c.b16 %v685, %v681
    %v962 = vpack.c.b16 %v686, %v682
    %v963 = vpack.c.b16 %v687, %v683
    %v964 = vpack.c.b16 %v688, %v684
    %v965 = vpack.c.b16 %v693, %v689
    %v966 = vpack.c.b16 %v694, %v690
    %v967 = vpack.c.b16 %v695, %v691
    %v968 = vpack.c.b16 %v696, %v692
    %v969 = vpack.c.b16 %v701, %v697
    %v970 = vpack.c.b16 %v702, %v698
    %v971 = vpack.c.b16 %v703, %v699
    %v972 = vpack.c.b16 %v704, %v700
    %v973 = vpack.c.b16 %v709, %v705
    %v974 = vpack.c.b16 %v710, %v706
    %v975 = vpack.c.b16 %v711, %v707
    %v976 = vpack.c.b16 %v712, %v708
    %v977 = vpack.c.b16 %v717, %v713
    %v978 = vpack.c.b16 %v718, %v714
    %v979 = vpack.c.b16 %v719, %v715
    %v980 = vpack.c.b16 %v720, %v716
    %v981 = vpack.c.b16 %v725, %v721
    %v982 = vpack.c.b16 %v726, %v722
    %v983 = vpack.c.b16 %v727, %v723
    %v984 = vpack.c.b16 %v728, %v724
    %v985 = vpack.c.b16 %v733, %v729
    %v986 = vpack.c.b16 %v734, %v730
    %v987 = vpack.c.b16 %v735, %v731
    %v988 = vpack.c.b16 %v736, %v732
    %v989 = vpack.c.b16 %v741, %v737
    %v990 = vpack.c.b16 %v742, %v738
    %v991 = vpack.c.b16 %v743, %v739
    %v992 = vpack.c.b16 %v744, %v740
    %v993 = vpack.c.b16 %v749, %v745
    %v994 = vpack.c.b16 %v750, %v746
    %v995 = vpack.c.b16 %v751, %v747
    %v996 = vpack.c.b16 %v752, %v748
    %v997 = vpack.c.b16 %v757, %v753
    %v998 = vpack.c.b16 %v758, %v754
    %v999 = vpack.c.b16 %v759, %v755
    %v1000 = vpack.c.b16 %v760, %v756
    %v1001 = vpack.c.b16 %v765, %v761
    %v1002 = vpack.c.b16 %v766, %v762
    %v1003 = vpack.c.b16 %v767, %v763
    %v1004 = vpack.c.b16 %v768, %v764
    %v1005 = vpack.c.b16 %v773, %v769
    %v1006 = vpack.c.b16 %v774, %v770
    %v1007 = vpack.c.b16 %v775, %v771
    %v1008 = vpack.c.b16 %v776, %v772
    %v1009 = vpack.c.b16 %v781, %v777
    %v1010 = vpack.c.b16 %v782, %v778
    %v1011 = vpack.c.b16 %v783, %v779
    %v1012 = vpack.c.b16 %v784, %v780
    %v1013 = vpack.c.b16 %v789, %v785
    %v1014 = vpack.c.b16 %v790, %v786
    %v1015 = vpack.c.b16 %v791, %v787
    %v1016 = vpack.c.b16 %v792, %v788
    %v1017 = vpack.c.b16 %v797, %v793
    %v1018 = vpack.c.b16 %v798, %v794
    %v1019 = vpack.c.b16 %v799, %v795
    %v1020 = vpack.c.b16 %v800, %v796
    %v1021 = vpack.c.b16 %v805, %v801
    %v1022 = vpack.c.b16 %v806, %v802
    %v1023 = vpack.c.b16 %v807, %v803
    %v1024 = vpack.c.b16 %v808, %v804
    %v1025 = vpack.c.b16 %v813, %v809
    %v1026 = vpack.c.b16 %v814, %v810
    %v1027 = vpack.c.b16 %v815, %v811
    %v1028 = vpack.c.b16 %v816, %v812
    %v1029 = vpack.c.b16 %v821, %v817
    %v1030 = vpack.c.b16 %v822, %v818
    %v1031 = vpack.c.b16 %v823, %v819
    %v1032 = vpack.c.b16 %v824, %v820
    %v1033 = vpack.c.b16 %v829, %v825
    %v1034 = vpack.c.b16 %v830, %v826
    %v1035 = vpack.c.b16 %v831, %v827
    %v1036 = vpack.c.b16 %v832, %v828
    %v1037 = vpack.c.b16 %v837, %v833
    %v1038 = vpack.c.b16 %v838, %v834
    %v1039 = vpack.c.b16 %v839, %v835
    %v1040 = vpack.c.b16 %v840, %v836
    %v1041 = vpack.c.b16 %v845, %v841
    %v1042 = vpack.c.b16 %v846, %v842
    %v1043 = vpack.c.b16 %v847, %v843
    %v1044 = vpack.c.b16 %v848, %v844
    %vm1241 = vcmask 130048
    %v1243 = vsel %vm1241, %v42, 0
    %1245 = vmatprep.subr.bf16.mxu0 %v850
    %1246 = vmatpush1.bf16.msra.mxu0 %v849
    %1247 = vmatprep.subr.bf16.mxu0 %v854
    %1248 = vmatpush1.bf16.msra.mxu0 %v853
    %1249 = vmatprep.subr.bf16.mxu0 %v858
    %1250 = vmatpush1.bf16.msra.mxu0 %v857
    %1251 = vmatprep.subr.bf16.mxu0 %v862
    %1252 = vmatpush1.bf16.msra.mxu0 %v861
    %1253 = vmatprep.subr.bf16.mxu0 %v866
    %1254 = vmatpush1.bf16.msra.mxu0 %v865
    %1255 = vmatprep.subr.bf16.mxu0 %v870
    %1256 = vmatpush1.bf16.msra.mxu0 %v869
    %1257 = vmatprep.subr.bf16.mxu0 %v874
    %1258 = vmatpush1.bf16.msra.mxu0 %v873
    %1259 = vmatprep.subr.bf16.mxu0 %v878
    %1260 = vmatpush1.bf16.msra.mxu0 %v877
    %1261 = vmatprep.subr.bf16.mxu0 %v882
    %1262 = vmatpush1.bf16.msra.mxu0 %v881
    %1263 = vmatprep.subr.bf16.mxu0 %v886
    %1264 = vmatpush1.bf16.msra.mxu0 %v885
    %1265 = vmatprep.subr.bf16.mxu0 %v890
    %1266 = vmatpush1.bf16.msra.mxu0 %v889
    %1267 = vmatprep.subr.bf16.mxu0 %v894
    %1268 = vmatpush1.bf16.msra.mxu0 %v893
    %1269 = vmatprep.subr.bf16.mxu0 %v898
    %1270 = vmatpush1.bf16.msra.mxu0 %v897
    %1271 = vmatprep.subr.bf16.mxu0 %v902
    %1272 = vmatpush1.bf16.msra.mxu0 %v901
    %1273 = vmatprep.subr.bf16.mxu0 %v906
    %1274 = vmatpush1.bf16.msra.mxu0 %v905
    %1275 = vmatprep.subr.bf16.mxu0 %v910
    %1276 = vmatpush1.bf16.msra.mxu0 %v909
    %1277 = vmatprep.mubr.bf16.mxu0 %v37
    %1278 = vmatmul.mubr.bf16.gmra.mrb[0].mxu0 %v36
    %v1279 = vpop.f32.mrb[0].mxu0
    %v1280 = vadd.f32 %v244, %v1279
    %v1281 = vpop.f32.mrb[0].mxu0
    %v1282 = vadd.f32 %v248, %v1281
    %v1283 = vpop.f32.mrb[0].mxu0
    %v1284 = vadd.f32 %v244, %v1283
    %v1285 = vpop.f32.mrb[0].mxu0
    %v1286 = vadd.f32 %v248, %v1285
    %1287 = vdwg.mxu0
    %1288 = vmatprep.subr.bf16.mxu0 %v914
    %1289 = vmatpush1.bf16.msra.mxu0 %v913
    %1290 = vmatprep.subr.bf16.mxu0 %v918
    %1291 = vmatpush1.bf16.msra.mxu0 %v917
    %1292 = vmatprep.subr.bf16.mxu0 %v922
    %1293 = vmatpush1.bf16.msra.mxu0 %v921
    %1294 = vmatprep.subr.bf16.mxu0 %v926
    %1295 = vmatpush1.bf16.msra.mxu0 %v925
    %1296 = vmatprep.subr.bf16.mxu0 %v930
    %1297 = vmatpush1.bf16.msra.mxu0 %v929
    %1298 = vmatprep.subr.bf16.mxu0 %v934
    %1299 = vmatpush1.bf16.msra.mxu0 %v933
    %1300 = vmatprep.subr.bf16.mxu0 %v938
    %1301 = vmatpush1.bf16.msra.mxu0 %v937
    %1302 = vmatprep.subr.bf16.mxu0 %v942
    %1303 = vmatpush1.bf16.msra.mxu0 %v941
    %1304 = vmatprep.subr.bf16.mxu0 %v946
    %1305 = vmatpush1.bf16.msra.mxu0 %v945
    %1306 = vmatprep.subr.bf16.mxu0 %v950
    %1307 = vmatpush1.bf16.msra.mxu0 %v949
    %1308 = vmatprep.subr.bf16.mxu0 %v954
    %1309 = vmatpush1.bf16.msra.mxu0 %v953
    %1310 = vmatprep.subr.bf16.mxu0 %v958
    %1311 = vmatpush1.bf16.msra.mxu0 %v957
    %1312 = vmatprep.subr.bf16.mxu0 %v962
    %1313 = vmatpush1.bf16.msra.mxu0 %v961
    %1314 = vmatprep.subr.bf16.mxu0 %v966
    %1315 = vmatpush1.bf16.msra.mxu0 %v965
    %1316 = vmatprep.subr.bf16.mxu0 %v970
    %1317 = vmatpush1.bf16.msra.mxu0 %v969
    %1318 = vmatprep.subr.bf16.mxu0 %v974
    %1319 = vmatpush1.bf16.msra.mxu0 %v973
    %1320 = vmatprep.mubr.bf16.mxu0 %v39
    %1321 = vmatmul.mubr.bf16.gmra.mrb[0].mxu0 %v38
    %v1322 = vpop.f32.mrb[0].mxu0
    %v1323 = vadd.f32 %v1280, %v1322
    %v1324 = vpop.f32.mrb[0].mxu0
    %v1325 = vadd.f32 %v1282, %v1324
    %v1326 = vpop.f32.mrb[0].mxu0
    %v1327 = vadd.f32 %v1284, %v1326
    %v1328 = vpop.f32.mrb[0].mxu0
    %v1329 = vadd.f32 %v1286, %v1328
    %1330 = vdwg.mxu0
    %1331 = vmatprep.subr.bf16.mxu0 %v978
    %1332 = vmatpush1.bf16.msra.mxu0 %v977
    %1333 = vmatprep.subr.bf16.mxu0 %v982
    %1334 = vmatpush1.bf16.msra.mxu0 %v981
    %1335 = vmatprep.subr.bf16.mxu0 %v986
    %1336 = vmatpush1.bf16.msra.mxu0 %v985
    %1337 = vmatprep.subr.bf16.mxu0 %v990
    %1338 = vmatpush1.bf16.msra.mxu0 %v989
    %1339 = vmatprep.subr.bf16.mxu0 %v994
    %1340 = vmatpush1.bf16.msra.mxu0 %v993
    %1341 = vmatprep.subr.bf16.mxu0 %v998
    %1342 = vmatpush1.bf16.msra.mxu0 %v997
    %1343 = vmatprep.subr.bf16.mxu0 %v1002
    %1344 = vmatpush1.bf16.msra.mxu0 %v1001
    %1345 = vmatprep.subr.bf16.mxu0 %v1006
    %1346 = vmatpush1.bf16.msra.mxu0 %v1005
    %1347 = vmatprep.subr.bf16.mxu0 %v1010
    %1348 = vmatpush1.bf16.msra.mxu0 %v1009
    %1349 = vmatprep.subr.bf16.mxu0 %v1014
    %1350 = vmatpush1.bf16.msra.mxu0 %v1013
    %1351 = vmatprep.subr.bf16.mxu0 %v1018
    %1352 = vmatpush1.bf16.msra.mxu0 %v1017
    %1353 = vmatprep.subr.bf16.mxu0 %v1022
    %1354 = vmatpush1.bf16.msra.mxu0 %v1021
    %1355 = vmatprep.subr.bf16.mxu0 %v1026
    %1356 = vmatpush1.bf16.msra.mxu0 %v1025
    %1357 = vmatprep.subr.bf16.mxu0 %v1030
    %1358 = vmatpush1.bf16.msra.mxu0 %v1029
    %1359 = vmatprep.subr.bf16.mxu0 %v1034
    %1360 = vmatpush1.bf16.msra.mxu0 %v1033
    %1361 = vmatprep.subr.bf16.mxu0 %v1038
    %1362 = vmatpush1.bf16.msra.mxu0 %v1037
    %1363 = vmatprep.mubr.bf16.mxu0 %v41
    %1364 = vmatmul.mubr.bf16.gmra.mrb[0].mxu0 %v40
    %v1365 = vpop.f32.mrb[0].mxu0
    %v1366 = vadd.f32 %v1323, %v1365
    %v1367 = vpop.f32.mrb[0].mxu0
    %v1368 = vadd.f32 %v1325, %v1367
    %v1369 = vpop.f32.mrb[0].mxu0
    %v1370 = vadd.f32 %v1327, %v1369
    %v1371 = vpop.f32.mrb[0].mxu0
    %v1372 = vadd.f32 %v1329, %v1371
    %1373 = vdwg.mxu0
    %1374 = vmatprep.subr.bf16.mxu0 %v1042
    %1375 = vmatpush1.bf16.msra.mxu0 %v1041
    %1376 = vmatprep.subr.bf16.mxu0 0
    %1377 = vmatpush1.bf16.msra.mxu0 0
    %1378 = vmatprep.subr.bf16.mxu0 0
    %1379 = vmatpush1.bf16.msra.mxu0 0
    %1380 = vmatprep.subr.bf16.mxu0 0
    %1381 = vmatpush1.bf16.msra.mxu0 0
    %1382 = vmatprep.subr.bf16.mxu0 0
    %1383 = vmatpush1.bf16.msra.mxu0 0
    %1384 = vmatprep.subr.bf16.mxu0 0
    %1385 = vmatpush1.bf16.msra.mxu0 0
    %1386 = vmatprep.subr.bf16.mxu0 0
    %1387 = vmatpush1.bf16.msra.mxu0 0
    %1388 = vmatprep.subr.bf16.mxu0 0
    %1389 = vmatpush1.bf16.msra.mxu0 0
    %1390 = vmatprep.subr.bf16.mxu0 0
    %1391 = vmatpush1.bf16.msra.mxu0 0
    %1392 = vmatprep.subr.bf16.mxu0 0
    %1393 = vmatpush1.bf16.msra.mxu0 0
    %1394 = vmatprep.subr.bf16.mxu0 0
    %1395 = vmatpush1.bf16.msra.mxu0 0
    %1396 = vmatprep.subr.bf16.mxu0 0
    %1397 = vmatpush1.bf16.msra.mxu0 0
    %1398 = vmatprep.subr.bf16.mxu0 0
    %1399 = vmatpush1.bf16.msra.mxu0 0
    %1400 = vmatprep.subr.bf16.mxu0 0
    %1401 = vmatpush1.bf16.msra.mxu0 0
    %1402 = vmatprep.subr.bf16.mxu0 0
    %1403 = vmatpush1.bf16.msra.mxu0 0
    %1404 = vmatprep.subr.bf16.mxu0 0
    %1405 = vmatpush1.bf16.msra.mxu0 0
    %1406 = vmatprep.mubr.bf16.mxu0 0
    %1407 = vmatmul.mubr.bf16.gmra.mrb[0].mxu0 %v1243
    %v1408 = vpop.f32.mrb[0].mxu0
    %v1409 = vadd.f32 %v1366, %v1408
    %v1410 = vpop.f32.mrb[0].mxu0
    %v1411 = vadd.f32 %v1368, %v1410
    %v1412 = vpop.f32.mrb[0].mxu0
    %v1413 = vadd.f32 %v1370, %v1412
    %v1414 = vpop.f32.mrb[0].mxu0
    %v1415 = vadd.f32 %v1372, %v1414
    %1416 = vdwg.mxu0
    %1417 = vmatprep.subr.bf16.mxu0 %v852
    %1418 = vmatpush1.bf16.msra.mxu0 %v851
    %1419 = vmatprep.subr.bf16.mxu0 %v856
    %1420 = vmatpush1.bf16.msra.mxu0 %v855
    %1421 = vmatprep.subr.bf16.mxu0 %v860
    %1422 = vmatpush1.bf16.msra.mxu0 %v859
    %1423 = vmatprep.subr.bf16.mxu0 %v864
    %1424 = vmatpush1.bf16.msra.mxu0 %v863
    %1425 = vmatprep.subr.bf16.mxu0 %v868
    %1426 = vmatpush1.bf16.msra.mxu0 %v867
    %1427 = vmatprep.subr.bf16.mxu0 %v872
    %1428 = vmatpush1.bf16.msra.mxu0 %v871
    %1429 = vmatprep.subr.bf16.mxu0 %v876
    %1430 = vmatpush1.bf16.msra.mxu0 %v875
    %1431 = vmatprep.subr.bf16.mxu0 %v880
    %1432 = vmatpush1.bf16.msra.mxu0 %v879
    %1433 = vmatprep.subr.bf16.mxu0 %v884
    %1434 = vmatpush1.bf16.msra.mxu0 %v883
    %1435 = vmatprep.subr.bf16.mxu0 %v888
    %1436 = vmatpush1.bf16.msra.mxu0 %v887
    %1437 = vmatprep.subr.bf16.mxu0 %v892
    %1438 = vmatpush1.bf16.msra.mxu0 %v891
    %1439 = vmatprep.subr.bf16.mxu0 %v896
    %1440 = vmatpush1.bf16.msra.mxu0 %v895
    %1441 = vmatprep.subr.bf16.mxu0 %v900
    %1442 = vmatpush1.bf16.msra.mxu0 %v899
    %1443 = vmatprep.subr.bf16.mxu0 %v904
    %1444 = vmatpush1.bf16.msra.mxu0 %v903
    %1445 = vmatprep.subr.bf16.mxu0 %v908
    %1446 = vmatpush1.bf16.msra.mxu0 %v907
    %1447 = vmatprep.subr.bf16.mxu0 %v912
    %1448 = vmatpush1.bf16.msra.mxu0 %v911
    %1449 = vmatprep.mubr.bf16.mxu0 %v37
    %1450 = vmatmul.mubr.bf16.gmra.mrb[0].mxu0 %v36
    %v1451 = vpop.f32.mrb[0].mxu0
    %v1452 = vadd.f32 %v252, %v1451
    %v1453 = vpop.f32.mrb[0].mxu0
    %v1454 = vadd.f32 %v256, %v1453
    %v1455 = vpop.f32.mrb[0].mxu0
    %v1456 = vadd.f32 %v252, %v1455
    %v1457 = vpop.f32.mrb[0].mxu0
    %v1458 = vadd.f32 %v256, %v1457
    %1459 = vdwg.mxu0
    %1460 = vmatprep.subr.bf16.mxu0 %v916
    %1461 = vmatpush1.bf16.msra.mxu0 %v915
    %1462 = vmatprep.subr.bf16.mxu0 %v920
    %1463 = vmatpush1.bf16.msra.mxu0 %v919
    %1464 = vmatprep.subr.bf16.mxu0 %v924
    %1465 = vmatpush1.bf16.msra.mxu0 %v923
    %1466 = vmatprep.subr.bf16.mxu0 %v928
    %1467 = vmatpush1.bf16.msra.mxu0 %v927
    %1468 = vmatprep.subr.bf16.mxu0 %v932
    %1469 = vmatpush1.bf16.msra.mxu0 %v931
    %1470 = vmatprep.subr.bf16.mxu0 %v936
    %1471 = vmatpush1.bf16.msra.mxu0 %v935
    %1472 = vmatprep.subr.bf16.mxu0 %v940
    %1473 = vmatpush1.bf16.msra.mxu0 %v939
    %1474 = vmatprep.subr.bf16.mxu0 %v944
    %1475 = vmatpush1.bf16.msra.mxu0 %v943
    %1476 = vmatprep.subr.bf16.mxu0 %v948
    %1477 = vmatpush1.bf16.msra.mxu0 %v947
    %1478 = vmatprep.subr.bf16.mxu0 %v952
    %1479 = vmatpush1.bf16.msra.mxu0 %v951
    %1480 = vmatprep.subr.bf16.mxu0 %v956
    %1481 = vmatpush1.bf16.msra.mxu0 %v955
    %1482 = vmatprep.subr.bf16.mxu0 %v960
    %1483 = vmatpush1.bf16.msra.mxu0 %v959
    %1484 = vmatprep.subr.bf16.mxu0 %v964
    %1485 = vmatpush1.bf16.msra.mxu0 %v963
    %1486 = vmatprep.subr.bf16.mxu0 %v968
    %1487 = vmatpush1.bf16.msra.mxu0 %v967
    %1488 = vmatprep.subr.bf16.mxu0 %v972
    %1489 = vmatpush1.bf16.msra.mxu0 %v971
    %1490 = vmatprep.subr.bf16.mxu0 %v976
    %1491 = vmatpush1.bf16.msra.mxu0 %v975
    %1492 = vmatprep.mubr.bf16.mxu0 %v39
    %1493 = vmatmul.mubr.bf16.gmra.mrb[0].mxu0 %v38
    %v1494 = vpop.f32.mrb[0].mxu0
    %v1495 = vadd.f32 %v1452, %v1494
    %v1496 = vpop.f32.mrb[0].mxu0
    %v1497 = vadd.f32 %v1454, %v1496
    %v1498 = vpop.f32.mrb[0].mxu0
    %v1499 = vadd.f32 %v1456, %v1498
    %v1500 = vpop.f32.mrb[0].mxu0
    %v1501 = vadd.f32 %v1458, %v1500
    %1502 = vdwg.mxu0
    %1503 = vmatprep.subr.bf16.mxu0 %v980
    %1504 = vmatpush1.bf16.msra.mxu0 %v979
    %1505 = vmatprep.subr.bf16.mxu0 %v984
    %1506 = vmatpush1.bf16.msra.mxu0 %v983
    %1507 = vmatprep.subr.bf16.mxu0 %v988
    %1508 = vmatpush1.bf16.msra.mxu0 %v987
    %1509 = vmatprep.subr.bf16.mxu0 %v992
    %1510 = vmatpush1.bf16.msra.mxu0 %v991
    %1511 = vmatprep.subr.bf16.mxu0 %v996
    %1512 = vmatpush1.bf16.msra.mxu0 %v995
    %1513 = vmatprep.subr.bf16.mxu0 %v1000
    %1514 = vmatpush1.bf16.msra.mxu0 %v999
    %1515 = vmatprep.subr.bf16.mxu0 %v1004
    %1516 = vmatpush1.bf16.msra.mxu0 %v1003
    %1517 = vmatprep.subr.bf16.mxu0 %v1008
    %1518 = vmatpush1.bf16.msra.mxu0 %v1007
    %1519 = vmatprep.subr.bf16.mxu0 %v1012
    %1520 = vmatpush1.bf16.msra.mxu0 %v1011
    %1521 = vmatprep.subr.bf16.mxu0 %v1016
    %1522 = vmatpush1.bf16.msra.mxu0 %v1015
    %1523 = vmatprep.subr.bf16.mxu0 %v1020
    %1524 = vmatpush1.bf16.msra.mxu0 %v1019
    %1525 = vmatprep.subr.bf16.mxu0 %v1024
    %1526 = vmatpush1.bf16.msra.mxu0 %v1023
    %1527 = vmatprep.subr.bf16.mxu0 %v1028
    %1528 = vmatpush1.bf16.msra.mxu0 %v1027
    %1529 = vmatprep.subr.bf16.mxu0 %v1032
    %1530 = vmatpush1.bf16.msra.mxu0 %v1031
    %1531 = vmatprep.subr.bf16.mxu0 %v1036
    %1532 = vmatpush1.bf16.msra.mxu0 %v1035
    %1533 = vmatprep.subr.bf16.mxu0 %v1040
    %1534 = vmatpush1.bf16.msra.mxu0 %v1039
    %1535 = vmatprep.mubr.bf16.mxu0 %v41
    %1536 = vmatmul.mubr.bf16.gmra.mrb[0].mxu0 %v40
    %v1537 = vpop.f32.mrb[0].mxu0
    %v1538 = vadd.f32 %v1495, %v1537
    %v1539 = vpop.f32.mrb[0].mxu0
    %v1540 = vadd.f32 %v1497, %v1539
    %v1541 = vpop.f32.mrb[0].mxu0
    %v1542 = vadd.f32 %v1499, %v1541
    %v1543 = vpop.f32.mrb[0].mxu0
    %v1544 = vadd.f32 %v1501, %v1543
    %1545 = vdwg.mxu0
    %1546 = vmatprep.subr.bf16.mxu0 %v1044
    %1547 = vmatpush1.bf16.msra.mxu0 %v1043
    %1548 = vmatprep.subr.bf16.mxu0 0
    %1549 = vmatpush1.bf16.msra.mxu0 0
    %1550 = vmatprep.subr.bf16.mxu0 0
    %1551 = vmatpush1.bf16.msra.mxu0 0
    %1552 = vmatprep.subr.bf16.mxu0 0
    %1553 = vmatpush1.bf16.msra.mxu0 0
    %1554 = vmatprep.subr.bf16.mxu0 0
    %1555 = vmatpush1.bf16.msra.mxu0 0
    %1556 = vmatprep.subr.bf16.mxu0 0
    %1557 = vmatpush1.bf16.msra.mxu0 0
    %1558 = vmatprep.subr.bf16.mxu0 0
    %1559 = vmatpush1.bf16.msra.mxu0 0
    %1560 = vmatprep.subr.bf16.mxu0 0
    %1561 = vmatpush1.bf16.msra.mxu0 0
    %1562 = vmatprep.subr.bf16.mxu0 0
    %1563 = vmatpush1.bf16.msra.mxu0 0
    %1564 = vmatprep.subr.bf16.mxu0 0
    %1565 = vmatpush1.bf16.msra.mxu0 0
    %1566 = vmatprep.subr.bf16.mxu0 0
    %1567 = vmatpush1.bf16.msra.mxu0 0
    %1568 = vmatprep.subr.bf16.mxu0 0
    %1569 = vmatpush1.bf16.msra.mxu0 0
    %1570 = vmatprep.subr.bf16.mxu0 0
    %1571 = vmatpush1.bf16.msra.mxu0 0
    %1572 = vmatprep.subr.bf16.mxu0 0
    %1573 = vmatpush1.bf16.msra.mxu0 0
    %1574 = vmatprep.subr.bf16.mxu0 0
    %1575 = vmatpush1.bf16.msra.mxu0 0
    %1576 = vmatprep.subr.bf16.mxu0 0
    %1577 = vmatpush1.bf16.msra.mxu0 0
    %1578 = vmatprep.mubr.bf16.mxu0 0
    %1579 = vmatmul.mubr.bf16.gmra.mrb[0].mxu0 %v1243
    %v1580 = vpop.f32.mrb[0].mxu0
    %v1581 = vadd.f32 %v1538, %v1580
    %v1582 = vpop.f32.mrb[0].mxu0
    %v1583 = vadd.f32 %v1540, %v1582
    %v1584 = vpop.f32.mrb[0].mxu0
    %v1585 = vadd.f32 %v1542, %v1584
    %v1586 = vpop.f32.mrb[0].mxu0
    %v1587 = vadd.f32 %v1544, %v1586
    %1588 = vdwg.mxu0
    %v1589 = vxor.u32 %v1409, 2147483648
    %v1590 = vxor.u32 %v1411, 2147483648
    %v1591 = vxor.u32 %v1581, 2147483648
    %v1592 = vxor.u32 %v1583, 2147483648
    %v1593 = vxor.u32 %v1413, 2147483648
    %v1594 = vxor.u32 %v1415, 2147483648
    %v1595 = vxor.u32 %v1585, 2147483648
    %v1596 = vxor.u32 %v1587, 2147483648
    %v1597 = vmul.f32 %v1589, 1.442695
    %v1598 = vpow.pop %v1597
    %v1599 = vmul.f32 %v1590, 1.442695
    %v1600 = vpow.pop %v1599
    %v1601 = vmul.f32 %v1591, 1.442695
    %v1602 = vpow.pop %v1601
    %v1603 = vmul.f32 %v1592, 1.442695
    %v1604 = vpow.pop %v1603
    %v1605 = vmul.f32 %v1593, 1.442695
    %v1606 = vpow.pop %v1605
    %v1607 = vmul.f32 %v1594, 1.442695
    %v1608 = vpow.pop %v1607
    %v1609 = vmul.f32 %v1595, 1.442695
    %v1610 = vpow.pop %v1609
    %v1611 = vmul.f32 %v1596, 1.442695
    %v1612 = vpow.pop %v1611
    %v1613 = vadd.f32 %v1598, 1.0
    %v1614 = vadd.f32 %v1600, 1.0
    %v1615 = vadd.f32 %v1602, 1.0
    %v1616 = vadd.f32 %v1604, 1.0
    %v1617 = vadd.f32 %v1606, 1.0
    %v1618 = vadd.f32 %v1608, 1.0
    %v1619 = vadd.f32 %v1610, 1.0
    %v1620 = vadd.f32 %v1612, 1.0
    %v1621 = vrcp.pop %v1613
    %v1622 = vmul.f32 1.0, %v1621
    %v1623 = vrcp.pop %v1614
    %v1624 = vmul.f32 1.0, %v1623
    %v1625 = vrcp.pop %v1615
    %v1626 = vmul.f32 1.0, %v1625
    %v1627 = vrcp.pop %v1616
    %v1628 = vmul.f32 1.0, %v1627
    %v1629 = vrcp.pop %v1617
    %v1630 = vmul.f32 1.0, %v1629
    %v1631 = vrcp.pop %v1618
    %v1632 = vmul.f32 1.0, %v1631
    %v1633 = vrcp.pop %v1619
    %v1634 = vmul.f32 1.0, %v1633
    %v1635 = vrcp.pop %v1620
    %v1636 = vmul.f32 1.0, %v1635
    %v1637 = vpack.c.bf16 %v1630, %v1622
    %v1638 = vpack.c.bf16 %v1632, %v1624
    %v1639 = vpack.c.bf16 %v1634, %v1626
    %v1640 = vpack.c.bf16 %v1636, %v1628
    %v1641 = vld [vmem:[%s3] sm:$0xf]
    %v1642 = vld [vmem:[%s3 + $0x4] sm:$0xf]
    %v1643 = vld [vmem:[%s3 + $0x8] sm:$0xf]
    %v1644 = vld [vmem:[%s3 + $0xc] sm:$0xf]
    %v1645 = vld [vmem:[%s3 + $0x10] sm:$0xf]
    %v1646 = vld [vmem:[%s3 + $0x14] sm:$0xf]
    %v1647 = vld [vmem:[%s3 + $0x18] sm:$0xf]
    %v1648 = vld [vmem:[%s3 + $0x1c] sm:$0xf]
    %v1649 = vld [vmem:[%s3 + $0x20] sm:$0xf]
    %v1650 = vld [vmem:[%s3 + $0x24] sm:$0xf]
    %v1651 = vld [vmem:[%s3 + $0x28] sm:$0xf]
    %v1652 = vld [vmem:[%s3 + $0x2c] sm:$0xf]
    %v1653 = vld [vmem:[%s3 + $0x30] sm:$0xf]
    %v1654 = vld [vmem:[%s3 + $0x34] sm:$0xf]
    %v1655 = vld [vmem:[%s3 + $0x38] sm:$0xf]
    %v1656 = vld [vmem:[%s3 + $0x3c] sm:$0xf]
    %v1657 = vld [vmem:[%s3 + $0x40] sm:$0xf]
    %v1658 = vld [vmem:[%s3 + $0x44] sm:$0xf]
    %v1659 = vld [vmem:[%s3 + $0x48] sm:$0xf]
    %v1660 = vld [vmem:[%s3 + $0x4c] sm:$0xf]
    %v1661 = vld [vmem:[%s3 + $0x50] sm:$0xf]
    %v1662 = vld [vmem:[%s3 + $0x54] sm:$0xf]
    %v1663 = vld [vmem:[%s3 + $0x58] sm:$0xf]
    %v1664 = vld [vmem:[%s3 + $0x5c] sm:$0xf]
    %v1665 = vld [vmem:[%s3 + $0x60] sm:$0xf]
    %v1666 = vld [vmem:[%s3 + $0x64] sm:$0xf]
    %v1667 = vld [vmem:[%s3 + $0x68] sm:$0xf]
    %v1668 = vld [vmem:[%s3 + $0x6c] sm:$0xf]
    %v1669 = vld [vmem:[%s3 + $0x70] sm:$0xf]
    %v1670 = vld [vmem:[%s3 + $0x74] sm:$0xf]
    %v1671 = vld [vmem:[%s3 + $0x78] sm:$0xf]
    %v1672 = vld [vmem:[%s3 + $0x7c] sm:$0xf]
    %v1673 = vld [vmem:[%s3 + $0x80] sm:$0xf]
    %v1674 = vld [vmem:[%s3 + $0x84] sm:$0xf]
    %v1675 = vld [vmem:[%s3 + $0x88] sm:$0xf]
    %v1676 = vld [vmem:[%s3 + $0x8c] sm:$0xf]
    %v1677 = vld [vmem:[%s3 + $0x90] sm:$0xf]
    %v1678 = vld [vmem:[%s3 + $0x94] sm:$0xf]
    %v1679 = vld [vmem:[%s3 + $0x98] sm:$0xf]
    %v1680 = vld [vmem:[%s3 + $0x9c] sm:$0xf]
    %v1681 = vld [vmem:[%s3 + $0xa0] sm:$0xf]
    %v1682 = vld [vmem:[%s3 + $0xa4] sm:$0xf]
    %v1683 = vld [vmem:[%s3 + $0xa8] sm:$0xf]
    %v1684 = vld [vmem:[%s3 + $0xac] sm:$0xf]
    %v1685 = vld [vmem:[%s3 + $0xb0] sm:$0xf]
    %v1686 = vld [vmem:[%s3 + $0xb4] sm:$0xf]
    %v1687 = vld [vmem:[%s3 + $0xb8] sm:$0xf]
    %v1688 = vld [vmem:[%s3 + $0xbc] sm:$0xf]
    %v1689 = vld [vmem:[%s3 + $0xc0] sm:$0xf]
    %v1690 = vld [vmem:[%s3 + $0xc4] sm:$0xf]
    %v1691 = vld [vmem:[%s4] sm:$0x1]
    %v1693 = vlaneseq
    %v1694 = vshrl.u32 %v1693, 7
    %v1695 = vsub.s32 0, %v1694
    %v1696 = vrot.slane %v1691, %v1695
    %v1748 = vunpack.c.l.b16 %v1641
    %v1749 = vunpack.c.l.b16 %v1642
    %v1750 = vunpack.c.l.b16 %v1643
    %v1751 = vunpack.c.l.b16 %v1644
    %v1752 = vunpack.c.l.b16 %v1645
    %v1753 = vunpack.c.l.b16 %v1646
    %v1754 = vunpack.c.l.b16 %v1647
    %v1755 = vunpack.c.l.b16 %v1648
    %v1756 = vunpack.c.l.b16 %v1649
    %v1757 = vunpack.c.l.b16 %v1650
    %v1758 = vunpack.c.l.b16 %v1651
    %v1759 = vunpack.c.l.b16 %v1652
    %v1760 = vunpack.c.l.b16 %v1653
    %v1761 = vunpack.c.l.b16 %v1654
    %v1762 = vunpack.c.l.b16 %v1655
    %v1763 = vunpack.c.l.b16 %v1656
    %v1764 = vunpack.c.l.b16 %v1657
    %v1765 = vunpack.c.l.b16 %v1658
    %v1766 = vunpack.c.l.b16 %v1659
    %v1767 = vunpack.c.l.b16 %v1660
    %v1768 = vunpack.c.l.b16 %v1661
    %v1769 = vunpack.c.l.b16 %v1662
    %v1770 = vunpack.c.l.b16 %v1663
    %v1771 = vunpack.c.l.b16 %v1664
    %v1772 = vunpack.c.l.b16 %v1665
    %v1773 = vunpack.c.l.b16 %v1666
    %v1774 = vunpack.c.l.b16 %v1667
    %v1775 = vunpack.c.l.b16 %v1668
    %v1776 = vunpack.c.l.b16 %v1669
    %v1777 = vunpack.c.l.b16 %v1670
    %v1778 = vunpack.c.l.b16 %v1671
    %v1779 = vunpack.c.l.b16 %v1672
    %v1780 = vunpack.c.l.b16 %v1673
    %v1781 = vunpack.c.l.b16 %v1674
    %v1782 = vunpack.c.l.b16 %v1675
    %v1783 = vunpack.c.l.b16 %v1676
    %v1784 = vunpack.c.l.b16 %v1677
    %v1785 = vunpack.c.l.b16 %v1678
    %v1786 = vunpack.c.l.b16 %v1679
    %v1787 = vunpack.c.l.b16 %v1680
    %v1788 = vunpack.c.l.b16 %v1681
    %v1789 = vunpack.c.l.b16 %v1682
    %v1790 = vunpack.c.l.b16 %v1683
    %v1791 = vunpack.c.l.b16 %v1684
    %v1792 = vunpack.c.l.b16 %v1685
    %v1793 = vunpack.c.l.b16 %v1686
    %v1794 = vunpack.c.l.b16 %v1687
    %v1795 = vunpack.c.l.b16 %v1688
    %v1796 = vunpack.c.l.b16 %v1689
    %v1797 = vunpack.c.l.b16 %v1690
    %v1798 = vpack.c.b16 %v1749, %v1748
    %v1799 = vpack.c.b16 %v1751, %v1750
    %v1800 = vpack.c.b16 %v1753, %v1752
    %v1801 = vpack.c.b16 %v1755, %v1754
    %v1802 = vpack.c.b16 %v1757, %v1756
    %v1803 = vpack.c.b16 %v1759, %v1758
    %v1804 = vpack.c.b16 %v1761, %v1760
    %v1805 = vpack.c.b16 %v1763, %v1762
    %v1806 = vpack.c.b16 %v1765, %v1764
    %v1807 = vpack.c.b16 %v1767, %v1766
    %v1808 = vpack.c.b16 %v1769, %v1768
    %v1809 = vpack.c.b16 %v1771, %v1770
    %v1810 = vpack.c.b16 %v1773, %v1772
    %v1811 = vpack.c.b16 %v1775, %v1774
    %v1812 = vpack.c.b16 %v1777, %v1776
    %v1813 = vpack.c.b16 %v1779, %v1778
    %v1814 = vpack.c.b16 %v1781, %v1780
    %v1815 = vpack.c.b16 %v1783, %v1782
    %v1816 = vpack.c.b16 %v1785, %v1784
    %v1817 = vpack.c.b16 %v1787, %v1786
    %v1818 = vpack.c.b16 %v1789, %v1788
    %v1819 = vpack.c.b16 %v1791, %v1790
    %v1820 = vpack.c.b16 %v1793, %v1792
    %v1821 = vpack.c.b16 %v1795, %v1794
    %v1822 = vpack.c.b16 %v1797, %v1796
    %v1849 = vsel %vm1241, %v1640, 0
    %1851 = vmatprep.subr.bf16.mxu0 0
    %1852 = vmatpush1.bf16.msra.mxu0 %v1798
    %1853 = vmatprep.subr.bf16.mxu0 0
    %1854 = vmatpush1.bf16.msra.mxu0 %v1799
    %1855 = vmatprep.subr.bf16.mxu0 0
    %1856 = vmatpush1.bf16.msra.mxu0 %v1800
    %1857 = vmatprep.subr.bf16.mxu0 0
    %1858 = vmatpush1.bf16.msra.mxu0 %v1801
    %1859 = vmatprep.subr.bf16.mxu0 0
    %1860 = vmatpush1.bf16.msra.mxu0 %v1802
    %1861 = vmatprep.subr.bf16.mxu0 0
    %1862 = vmatpush1.bf16.msra.mxu0 %v1803
    %1863 = vmatprep.subr.bf16.mxu0 0
    %1864 = vmatpush1.bf16.msra.mxu0 %v1804
    %1865 = vmatprep.subr.bf16.mxu0 0
    %1866 = vmatpush1.bf16.msra.mxu0 %v1805
    %1867 = vmatprep.subr.bf16.mxu0 0
    %1868 = vmatpush1.bf16.msra.mxu0 %v1806
    %1869 = vmatprep.subr.bf16.mxu0 0
    %1870 = vmatpush1.bf16.msra.mxu0 %v1807
    %1871 = vmatprep.subr.bf16.mxu0 0
    %1872 = vmatpush1.bf16.msra.mxu0 %v1808
    %1873 = vmatprep.subr.bf16.mxu0 0
    %1874 = vmatpush1.bf16.msra.mxu0 %v1809
    %1875 = vmatprep.subr.bf16.mxu0 0
    %1876 = vmatpush1.bf16.msra.mxu0 %v1810
    %1877 = vmatprep.subr.bf16.mxu0 0
    %1878 = vmatpush1.bf16.msra.mxu0 %v1811
    %1879 = vmatprep.subr.bf16.mxu0 0
    %1880 = vmatpush1.bf16.msra.mxu0 %v1812
    %1881 = vmatprep.subr.bf16.mxu0 0
    %1882 = vmatpush1.bf16.msra.mxu0 %v1813
    %1883 = vmatprep.mubr.bf16.mxu0 %v1638
    %1884 = vmatmul.mubr.bf16.gmra.mrb[0].mxu0 %v1637
    %v1885 = vpop.f32.mrb[0].mxu0
    %v1886 = vadd.f32 %v1696, %v1885
    %v1887 = vpop.f32.mrb[0].mxu0
    %v1888 = vpop.f32.mrb[0].mxu0
    %v1889 = vadd.f32 %v1696, %v1888
    %v1890 = vpop.f32.mrb[0].mxu0
    %1891 = vdwg.mxu0
    %1892 = vmatprep.subr.bf16.mxu0 0
    %1893 = vmatpush1.bf16.msra.mxu0 %v1814
    %1894 = vmatprep.subr.bf16.mxu0 0
    %1895 = vmatpush1.bf16.msra.mxu0 %v1815
    %1896 = vmatprep.subr.bf16.mxu0 0
    %1897 = vmatpush1.bf16.msra.mxu0 %v1816
    %1898 = vmatprep.subr.bf16.mxu0 0
    %1899 = vmatpush1.bf16.msra.mxu0 %v1817
    %1900 = vmatprep.subr.bf16.mxu0 0
    %1901 = vmatpush1.bf16.msra.mxu0 %v1818
    %1902 = vmatprep.subr.bf16.mxu0 0
    %1903 = vmatpush1.bf16.msra.mxu0 %v1819
    %1904 = vmatprep.subr.bf16.mxu0 0
    %1905 = vmatpush1.bf16.msra.mxu0 %v1820
    %1906 = vmatprep.subr.bf16.mxu0 0
    %1907 = vmatpush1.bf16.msra.mxu0 %v1821
    %1908 = vmatprep.subr.bf16.mxu0 0
    %1909 = vmatpush1.bf16.msra.mxu0 %v1822
    %1910 = vmatprep.subr.bf16.mxu0 0
    %1911 = vmatpush1.bf16.msra.mxu0 0
    %1912 = vmatprep.subr.bf16.mxu0 0
    %1913 = vmatpush1.bf16.msra.mxu0 0
    %1914 = vmatprep.subr.bf16.mxu0 0
    %1915 = vmatpush1.bf16.msra.mxu0 0
    %1916 = vmatprep.subr.bf16.mxu0 0
    %1917 = vmatpush1.bf16.msra.mxu0 0
    %1918 = vmatprep.subr.bf16.mxu0 0
    %1919 = vmatpush1.bf16.msra.mxu0 0
    %1920 = vmatprep.subr.bf16.mxu0 0
    %1921 = vmatpush1.bf16.msra.mxu0 0
    %1922 = vmatprep.subr.bf16.mxu0 0
    %1923 = vmatpush1.bf16.msra.mxu0 0
    %1924 = vmatprep.mubr.bf16.mxu0 %v1849
    %1925 = vmatmul.mubr.bf16.gmra.mrb[0].mxu0 %v1639
    %v1926 = vpop.f32.mrb[0].mxu0
    %v1927 = vadd.f32 %v1886, %v1926
    %v1928 = vpop.f32.mrb[0].mxu0
    %v1929 = vpop.f32.mrb[0].mxu0
    %v1930 = vadd.f32 %v1889, %v1929
    %v1931 = vpop.f32.mrb[0].mxu0
    %1932 = vdwg.mxu0
    %1933 = vst [vmem:[#allocation2] sm:$0xff] %v1927
    %1934 = vst [vmem:[#allocation2 + $0x8] sm:$0xff] %v1930
    // Predicated region
    $region22: #{tpu_custom_call.1} parent=1 // pred_check
      _
    $region23: #{tpu_custom_call.1} parent=1 // pred_check_branch
      %1936 = sbr.rel (0) target = $region25
    $region24: #{tpu_custom_call.1} parent=1 // pred_region
      %s1938 = ssub.s32 256, 256
      %1939 = vsyncadd [#allocation3], %s1938
      %s1940 = sshll.u32 [#allocation2], 4
      %s1941 = int_to_ptr.vmem [resolvable:$true] %s1940
      %1946 = dma.vmem_to_hbm [thread:$0]  %s1941, 256, %s5, [#allocation3], 128, 128, 8
    $region25: #{tpu_custom_call.1} parent=1 // pred_fallthru
      _
    // Predicated region
    $region26: #{tpu_custom_call.1} parent=1 // pred_check
      _
    $region27: #{tpu_custom_call.1} parent=1 // pred_check_branch
      %1948 = sbr.rel (0) target = $region29
    $region28: #{tpu_custom_call.1} parent=1 // pred_region
      %1949 = dma.done [#allocation3], 256
    $region29: #{tpu_custom_call.1} parent=1 // pred_fallthru
      _
    %1950 = vsyncpa [#allocation3], 1

</llo_original>
